<compile_context>
chip_gen: v7x
topology: tpu7x:2x2x1
jax: 0.10.0
libtpu: 0.0.40
codegen_flags: <defaults>
</compile_context>

<pallas_src>
import math
import functools

import jax
import jax.numpy as jnp
from jax.scipy.linalg import block_diag
from jax.experimental import pallas as pl
from jax.experimental.pallas import tpu as pltpu

XPAD = 8      # layer-1 input padded to 8 columns: [x | 1 | 0...] (ones col folds bias)
LANES = 128   # every weight block / the output slab is padded to 128 lanes


def _round8(n):
    return (n + 7) // 8 * 8


def slab_layout(H):
    """8-aligned row offsets of the packed weight slab."""
    off = {}
    off["wih1"] = 0                       # (XPAD,128): [wih1 ; gib1 ; 0]
    off["whh1"] = XPAD                    # (H,128)
    off["w2f"] = off["whh1"] + H          # (2H,128) fused layer-2 weights
    off["w1c"] = off["w2f"] + 2 * H       # (H,128)  head layer-1 (concat)
    off["w2bd"] = off["w1c"] + H          # (128,128) head layer-2 (block-diag)
    off["bias"] = off["w2bd"] + LANES     # 4 rows: bhn1, b2row, b1c, b2c
    off["rows"] = _round8(off["bias"] + 4)
    return off


# ---------------------------------------------------------------------------
# Fused Pallas kernel (2-layer GRU wavefront + mixture heads)
# ---------------------------------------------------------------------------
def make_pgrnn_kernel(T, B, H):
    off = slab_layout(H)
    OW, OH1, OW2 = off["wih1"], off["whh1"], off["w2f"]
    OW1C, OBD, OBI = off["w1c"], off["w2bd"], off["bias"]

    def kernel(x_ref, w_ref, out_ref):
        # ---- one-time weight / bias loads (8-aligned static row slices) ----
        wih1 = w_ref[OW:OW + XPAD, :]            # (8,128) cols 0:3H valid (+gib1 row)
        whh1 = w_ref[OH1:OH1 + H, :]             # (H,128) cols 0:3H valid
        w2f = w_ref[OW2:OW2 + 2 * H, :]          # (2H,128) [r|z | n_in | n_hid]
        w1c = w_ref[OW1C:OW1C + H, :]            # (H,128)
        w2bd = w_ref[OBD:OBD + LANES, :]         # (128,128)
        bhn1 = jnp.broadcast_to(w_ref[OBI:OBI + 1, 0:H], (B, H))        # hoisted bcast
        b2r = jnp.broadcast_to(w_ref[OBI + 1:OBI + 2, :], (B, LANES))   # hoisted bcast
        b1c = w_ref[OBI + 2:OBI + 3, :]          # (1,128)
        b2c = w_ref[OBI + 3:OBI + 4, :]          # (1,128)

        # ---- hoisted layer-1 input projection (ones column folds the bias) ----
        gi1_all = jnp.dot(x_ref[...], wih1, preferred_element_type=jnp.float32)

        h1 = jnp.zeros((B, H), jnp.float32)
        h2 = jnp.zeros((B, H), jnp.float32)
        outs2 = []
        for t in range(T):                       # static unroll, wavefront schedule
            # --- layer-1 step t ---
            gi1 = gi1_all[t * B:(t + 1) * B]
            gh1 = jnp.dot(h1, whh1, preferred_element_type=jnp.float32)
            r1 = jax.nn.sigmoid(gi1[:, 0:H] + gh1[:, 0:H])
            z1 = jax.nn.sigmoid(gi1[:, H:2 * H] + gh1[:, H:2 * H])
            n1 = jnp.tanh(gi1[:, 2 * H:3 * H] + r1 * (gh1[:, 2 * H:3 * H] + bhn1))
            h1 = n1 + z1 * (h1 - n1)             # == (1-z)*n + z*h

            # --- layer-2 step t (needs only h1_t, h2_{t-1}) ---
            h12 = jnp.concatenate([h1, h2], axis=1)                        # (B,2H)
            y2 = jnp.dot(h12, w2f, preferred_element_type=jnp.float32) + b2r
            r2 = jax.nn.sigmoid(y2[:, 0:H])
            z2 = jax.nn.sigmoid(y2[:, H:2 * H])
            n2 = jnp.tanh(y2[:, 2 * H:3 * H] + r2 * y2[:, 3 * H:4 * H])
            h2 = n2 + z2 * (h2 - n2)
            outs2.append(h2)

        feats = jnp.concatenate(outs2, axis=0)                             # (T*B,H)

        # ---- fused mixture heads, lane-dense 128-wide all the way ----
        hid = jnp.dot(feats, w1c, preferred_element_type=jnp.float32) + b1c
        hid = jnp.maximum(hid, 0.0)                                        # ReLU
        y = jnp.dot(hid, w2bd, preferred_element_type=jnp.float32) + b2c   # (T*B,128)

        # ---- single lane-dense output slab: [ y ; h1_T ; h2_T ; zero pad ] ----
        parts = [h1, h2]
        if 8 - 2 * B > 0:
            parts.append(jnp.zeros((8 - 2 * B, H), jnp.float32))
        hrows = jnp.concatenate(parts, axis=0)                             # (8,H)
        hrows = jnp.concatenate(
            [hrows, jnp.zeros((8, LANES - H), jnp.float32)], axis=1)       # (8,128)
        out_ref[...] = jnp.concatenate([y, hrows], axis=0)

    return kernel


# ---------------------------------------------------------------------------
# One-time parameter packing (kept OUT of the per-call jit path)
# ---------------------------------------------------------------------------
def pack_params(params, input_size, node_num, latent_size, num_comps):
    H = latent_size
    K = num_comps
    off = slab_layout(H)
    assert len(params["gru"]) == 2, "kernel is specialized to depth=2"
    assert 4 * H <= LANES, "fused layer-2 layout needs 4*latent_size <= 128"
    assert input_size + 1 <= XPAD
    assert 2 * K * node_num + K <= LANES

    g1, g2 = params["gru"]
    f32 = jnp.float32

    def pad_cols(a, w=LANES):
        return jnp.pad(a, ((0, 0), (0, w - a.shape[1])))

    # layer-1 block: [wih1 ; gib1 ; zero pad]  (ones column in x selects gib1)
    gib1 = g1["bih"] + jnp.concatenate(
        [g1["bhh"][:, :2 * H], jnp.zeros((1, H), f32)], axis=1)
    wih1_blk = jnp.concatenate(
        [g1["wih_t"], gib1,
         jnp.zeros((XPAD - input_size - 1, 3 * H), f32)], axis=0)
    wih1_blk = pad_cols(wih1_blk)                                   # (8,128)
    whh1_blk = pad_cols(g1["whh_t"])                                # (H,128)

    # layer-2 fused weights: columns [ r|z (input+hidden) | n_input | n_hidden ]
    wih2, whh2 = g2["wih_t"], g2["whh_t"]
    top = jnp.concatenate([wih2[:, :2 * H], wih2[:, 2 * H:],
                           jnp.zeros((H, H), f32)], axis=1)
    bot = jnp.concatenate([whh2[:, :2 * H], jnp.zeros((H, H), f32),
                           whh2[:, 2 * H:]], axis=1)
    w2f_blk = pad_cols(jnp.concatenate([top, bot], axis=0))         # (2H,128)
    b2row = pad_cols(jnp.concatenate(
        [g2["bih"][:, :2 * H] + g2["bhh"][:, :2 * H],
         g2["bih"][:, 2 * H:], g2["bhh"][:, 2 * H:]], axis=1))      # (1,128)

    # heads: concatenated layer-1, block-diagonal layer-2, padded to 128 lanes
    heads = params["mu"] + params["prec"] + [params["cw"]]
    w1c = pad_cols(jnp.concatenate([hp["w1"] for hp in heads], axis=1))   # (H,128)
    b1c = pad_cols(jnp.concatenate([hp["b1"] for hp in heads], axis=1))
    w2bd = block_diag(*[hp["w2"] for hp in heads])
    w2bd = pad_cols(jnp.pad(w2bd, ((0, LANES - w2bd.shape[0]), (0, 0))))  # (128,128)
    b2c = pad_cols(jnp.concatenate([hp["b2"] for hp in heads], axis=1))

    bhn1 = pad_cols(g1["bhh"][:, 2 * H:])                                 # (1,128)

    slab = jnp.concatenate(
        [wih1_blk, whh1_blk, w2f_blk, w1c, w2bd, bhn1, b2row, b1c, b2c], axis=0)
    slab = jnp.pad(slab, ((0, off["rows"] - slab.shape[0]), (0, 0)))
    assert slab.shape == (off["rows"], LANES)
    return slab.astype(f32)


# ---------------------------------------------------------------------------
# Forward wrapper (single pallas_call; only data-dependent ops live under jit)
# ---------------------------------------------------------------------------
def pgrnn_forward(X, w_slab, *, prec_thresh, latent_size, node_num, num_comps,
                  depth=2):
    B, T, Din = X.shape
    H = latent_size
    K = num_comps
    NMU = K * node_num
    assert depth == 2 and 2 * B <= 8 and Din + 1 <= XPAD

    # time-major flattened input; ones column folds the layer-1 gate bias
    x_flat = jnp.transpose(X, (1, 0, 2)).reshape(T * B, Din)
    x_aug = jnp.concatenate(
        [x_flat, jnp.ones((T * B, 1), jnp.float32),
         jnp.zeros((T * B, XPAD - Din - 1), jnp.float32)], axis=1)

    kernel = make_pgrnn_kernel(T, B, H)
    n_rows = T * B + 8
    # TODO(synk): at B>=8-16 per-batch sharding over 2 TCs (v7x) via a
    # ("parallel",) grid would pay off; at B=2 single-core is fastest.
    slab = pl.pallas_call(
        kernel,
        out_shape=jax.ShapeDtypeStruct((n_rows, LANES), jnp.float32),
        in_specs=[pl.BlockSpec(memory_space=pltpu.MemorySpace.VMEM)] * 2,
        out_specs=pl.BlockSpec(memory_space=pltpu.MemorySpace.VMEM),
    )(x_aug, w_slab)

    # split / clamp / normalize in the wrapper (fuses with the reshapes below)
    y = slab[:T * B]
    mu = y[:, 0:NMU].reshape(T, B, K, node_num).transpose(1, 2, 0, 3)
    prec = jnp.clip(y[:, NMU:2 * NMU], prec_thresh[0], prec_thresh[1])
    prec = prec.reshape(T, B, K, node_num).transpose(1, 2, 0, 3)
    v = jnp.abs(y[:, 2 * NMU:2 * NMU + K]) + 0.001
    cw = (v / jnp.sum(v, axis=-1, keepdims=True)).reshape(T, B, K).transpose(1, 0, 2)
    H_out = slab[T * B:T * B + depth * B, 0:H].reshape(depth, B, H)
    return mu, prec, cw, H_out


# ---------------------------------------------------------------------------
# Parameter init (deterministic, PyTorch-default-style uniform bounds)
# ---------------------------------------------------------------------------
def init_params(key, input_size, node_num, latent_size, depth, num_comps):
    keys = iter(jax.random.split(key, 256))

    def u(shape, bound):
        return jax.random.uniform(next(keys), shape, jnp.float32, -bound, bound)

    params = {"gru": [], "mu": [], "prec": [], "cw": None}

    kg = 1.0 / math.sqrt(latent_size)
    din = input_size
    for _ in range(depth):
        params["gru"].append(dict(
            wih_t=u((din, 3 * latent_size), kg),
            whh_t=u((latent_size, 3 * latent_size), kg),
            bih=u((1, 3 * latent_size), kg),
            bhh=u((1, 3 * latent_size), kg)))
        din = latent_size

    def head_params(n_in, n_out):
        k1 = 1.0 / math.sqrt(n_in)
        k2 = 1.0 / math.sqrt(n_out)
        return dict(w1=u((n_in, n_out), k1), b1=u((1, n_out), k1),
                    w2=u((n_out, n_out), k2), b2=u((1, n_out), k2))

    for _ in range(num_comps):
        params["mu"].append(head_params(latent_size, node_num))
        params["prec"].append(head_params(latent_size, node_num))
    if num_comps > 1:
        params["cw"] = head_params(latent_size, num_comps)
    return params


# ---------------------------------------------------------------------------
# Pure-JAX reference (PyTorch GRU / head semantics, high precision)
# ---------------------------------------------------------------------------
def pgrnn_reference(params, X, prec_thresh, latent_size, node_num, num_comps):
    hi_prec = jax.lax.Precision.HIGHEST
    dot = functools.partial(jnp.dot, precision=hi_prec)
    B, T, _ = X.shape
    inp = X
    h_finals = []
    for lp in params["gru"]:
        H = latent_size
        h = jnp.zeros((B, H), jnp.float32)
        outs = []
        for t in range(T):
            gi = dot(inp[:, t], lp["wih_t"]) + lp["bih"]
            gh = dot(h, lp["whh_t"]) + lp["bhh"]
            r = jax.nn.sigmoid(gi[:, :H] + gh[:, :H])
            z = jax.nn.sigmoid(gi[:, H:2 * H] + gh[:, H:2 * H])
            n = jnp.tanh(gi[:, 2 * H:] + r * gh[:, 2 * H:])
            h = (1.0 - z) * n + z * h
            outs.append(h)
        inp = jnp.stack(outs, axis=1)
        h_finals.append(h)
    feats = inp                                          # (B, T, H)

    def head(hp):
        hh = jnp.maximum(dot(feats, hp["w1"]) + hp["b1"], 0.0)
        return dot(hh, hp["w2"]) + hp["b2"]

    mu = jnp.stack([head(hp) for hp in params["mu"]], axis=1)
    prec = jnp.stack([head(hp) for hp in params["prec"]], axis=1)
    prec = jnp.minimum(jnp.maximum(prec, prec_thresh[0]), prec_thresh[1])
    cw = head(params["cw"])
    v = jnp.abs(cw) + 0.001
    cw = v / jnp.sum(v, axis=-1, keepdims=True)
    return mu, prec, cw, jnp.stack(h_finals, axis=0)


# ---------------------------------------------------------------------------
if __name__ == "__main__":
    # Config (small, consistent with the module's forward)
    input_size, node_num = 4, 16
    latent_size, depth, num_comps = 32, 2, 2
    prec_thresh = (0.1, 10.0)      # (down, up)
    B, T = 2, 8

    key = jax.random.PRNGKey(0)
    kp, kx = jax.random.split(key)
    params = init_params(kp, input_size, node_num, latent_size, depth, num_comps)
    X = jax.random.normal(kx, (B, T, input_size), jnp.float32)

    # One-time parameter packing (outside the per-call jit path).
    w_slab = jax.block_until_ready(
        pack_params(params, input_size, node_num, latent_size, num_comps))

    fwd = jax.jit(functools.partial(
        pgrnn_forward, prec_thresh=prec_thresh, latent_size=latent_size,
        node_num=node_num, num_comps=num_comps, depth=depth))

    mu, prec, cw, Hfin = jax.block_until_ready(fwd(X, w_slab))

    # Shape checks (PyTorch conventions)
    assert mu.shape == (B, num_comps, T, node_num)
    assert prec.shape == (B, num_comps, T, node_num)
    assert cw.shape == (B, T, num_comps)
    assert Hfin.shape == (depth, B, latent_size)

    # Numerical check against a pure-JAX reference
    mu_r, prec_r, cw_r, H_r = pgrnn_reference(
        params, X, prec_thresh, latent_size, node_num, num_comps)
    assert jnp.allclose(mu, mu_r, atol=2e-3, rtol=2e-3)
    assert jnp.allclose(prec, prec_r, atol=2e-3, rtol=2e-3)
    assert jnp.allclose(cw, cw_r, atol=2e-3, rtol=2e-3)
    assert jnp.allclose(Hfin, H_r, atol=2e-3, rtol=2e-3)
    assert jnp.all(prec >= prec_thresh[0] - 1e-6) and jnp.all(prec <= prec_thresh[1] + 1e-6)
    assert jnp.allclose(jnp.sum(cw, axis=-1), 1.0, atol=1e-4)

    print("KERNEL_OK")
</pallas_src>

<mosaic_0001>
module attributes {stable_mosaic.version = 11 : i64} {
  func.func @kernel(%arg0: memref<16x8xf32, #tpu.memory_space<vmem>>, %arg1: memref<272x128xf32, #tpu.memory_space<vmem>>, %arg2: memref<24x128xf32, #tpu.memory_space<vmem>>) attributes {dimension_semantics = [], scalar_prefetch = 0 : i64, scratch_operands = 0 : i64, tpu.core_type = #tpu.core_type<tc>} {
    %c0 = arith.constant 0 : index
    %c0_0 = arith.constant 0 : index
    %0 = vector.load %arg1[%c0, %c0_0] : memref<272x128xf32, #tpu.memory_space<vmem>>, vector<8x128xf32>
    %c8 = arith.constant 8 : index
    %c0_1 = arith.constant 0 : index
    %1 = vector.load %arg1[%c8, %c0_1] : memref<272x128xf32, #tpu.memory_space<vmem>>, vector<32x128xf32>
    %c40 = arith.constant 40 : index
    %c0_2 = arith.constant 0 : index
    %2 = vector.load %arg1[%c40, %c0_2] : memref<272x128xf32, #tpu.memory_space<vmem>>, vector<64x128xf32>
    %c104 = arith.constant 104 : index
    %c0_3 = arith.constant 0 : index
    %3 = vector.load %arg1[%c104, %c0_3] : memref<272x128xf32, #tpu.memory_space<vmem>>, vector<32x128xf32>
    %c136 = arith.constant 136 : index
    %c0_4 = arith.constant 0 : index
    %4 = vector.load %arg1[%c136, %c0_4] : memref<272x128xf32, #tpu.memory_space<vmem>>, vector<128x128xf32>
    %c264 = arith.constant 264 : index
    %c0_5 = arith.constant 0 : index
    %5 = vector.load %arg1[%c264, %c0_5] : memref<272x128xf32, #tpu.memory_space<vmem>>, vector<1x32xf32>
    %6 = vector.shape_cast %5 : vector<1x32xf32> to vector<1x32xf32>
    %7 = vector.broadcast %6 : vector<1x32xf32> to vector<2x32xf32>
    %c265 = arith.constant 265 : index
    %c0_6 = arith.constant 0 : index
    %8 = vector.load %arg1[%c265, %c0_6] : memref<272x128xf32, #tpu.memory_space<vmem>>, vector<1x128xf32>
    %9 = vector.shape_cast %8 : vector<1x128xf32> to vector<1x128xf32>
    %10 = vector.broadcast %9 : vector<1x128xf32> to vector<2x128xf32>
    %c266 = arith.constant 266 : index
    %c0_7 = arith.constant 0 : index
    %11 = vector.load %arg1[%c266, %c0_7] : memref<272x128xf32, #tpu.memory_space<vmem>>, vector<1x128xf32>
    %c267 = arith.constant 267 : index
    %c0_8 = arith.constant 0 : index
    %12 = vector.load %arg1[%c267, %c0_8] : memref<272x128xf32, #tpu.memory_space<vmem>>, vector<1x128xf32>
    %c0_9 = arith.constant 0 : index
    %c0_10 = arith.constant 0 : index
    %13 = vector.load %arg0[%c0_9, %c0_10] : memref<16x8xf32, #tpu.memory_space<vmem>>, vector<16x8xf32>
    %cst = arith.constant dense<0.000000e+00> : vector<16x128xf32>
    %14 = tpu.matmul %13, %0, %cst {dimension_numbers = #tpu.dot_dimension_numbers<[1], [0], [0], [1], [0, 0, 1, 1], [], []>} : vector<16x8xf32>, vector<8x128xf32>, vector<16x128xf32> -> vector<16x128xf32>
    %cst_11 = arith.constant 0.000000e+00 : f32
    %15 = vector.broadcast %cst_11 : f32 to vector<2x32xf32>
    %cst_12 = arith.constant 0.000000e+00 : f32
    %16 = vector.broadcast %cst_12 : f32 to vector<2x32xf32>
    %17 = vector.extract_strided_slice %14 {offsets = [0, 0], sizes = [2, 128], strides = [1, 1]} : vector<16x128xf32> to vector<2x128xf32>
    %cst_13 = arith.constant dense<0.000000e+00> : vector<2x128xf32>
    %18 = tpu.matmul %15, %1, %cst_13 {dimension_numbers = #tpu.dot_dimension_numbers<[1], [0], [0], [1], [0, 0, 1, 1], [], []>} : vector<2x32xf32>, vector<32x128xf32>, vector<2x128xf32> -> vector<2x128xf32>
    %19 = vector.extract_strided_slice %17 {offsets = [0, 0], sizes = [2, 32], strides = [1, 1]} : vector<2x128xf32> to vector<2x32xf32>
    %20 = vector.extract_strided_slice %18 {offsets = [0, 0], sizes = [2, 32], strides = [1, 1]} : vector<2x128xf32> to vector<2x32xf32>
    %21 = arith.addf %19, %20 : vector<2x32xf32>
    %22 = arith.negf %21 : vector<2x32xf32>
    %23 = math.exp %22 : vector<2x32xf32>
    %cst_14 = arith.constant 1.000000e+00 : f32
    %24 = vector.broadcast %cst_14 : f32 to vector<2x32xf32>
    %25 = arith.addf %24, %23 : vector<2x32xf32>
    %26 = arith.divf %24, %25 : vector<2x32xf32>
    %27 = vector.extract_strided_slice %17 {offsets = [0, 32], sizes = [2, 32], strides = [1, 1]} : vector<2x128xf32> to vector<2x32xf32>
    %28 = vector.extract_strided_slice %18 {offsets = [0, 32], sizes = [2, 32], strides = [1, 1]} : vector<2x128xf32> to vector<2x32xf32>
    %29 = arith.addf %27, %28 : vector<2x32xf32>
    %30 = arith.negf %29 : vector<2x32xf32>
    %31 = math.exp %30 : vector<2x32xf32>
    %cst_15 = arith.constant 1.000000e+00 : f32
    %32 = vector.broadcast %cst_15 : f32 to vector<2x32xf32>
    %33 = arith.addf %32, %31 : vector<2x32xf32>
    %34 = arith.divf %32, %33 : vector<2x32xf32>
    %35 = vector.extract_strided_slice %17 {offsets = [0, 64], sizes = [2, 32], strides = [1, 1]} : vector<2x128xf32> to vector<2x32xf32>
    %36 = vector.extract_strided_slice %18 {offsets = [0, 64], sizes = [2, 32], strides = [1, 1]} : vector<2x128xf32> to vector<2x32xf32>
    %37 = arith.addf %36, %7 : vector<2x32xf32>
    %38 = arith.mulf %26, %37 : vector<2x32xf32>
    %39 = arith.addf %35, %38 : vector<2x32xf32>
    %40 = math.tanh %39 : vector<2x32xf32>
    %41 = arith.subf %15, %40 : vector<2x32xf32>
    %42 = arith.mulf %34, %41 : vector<2x32xf32>
    %43 = arith.addf %40, %42 : vector<2x32xf32>
    %44 = tpu.concatenate %43, %16 in 1 : vector<2x32xf32>, vector<2x32xf32> -> vector<2x64xf32>
    %cst_16 = arith.constant dense<0.000000e+00> : vector<2x128xf32>
    %45 = tpu.matmul %44, %2, %cst_16 {dimension_numbers = #tpu.dot_dimension_numbers<[1], [0], [0], [1], [0, 0, 1, 1], [], []>} : vector<2x64xf32>, vector<64x128xf32>, vector<2x128xf32> -> vector<2x128xf32>
    %46 = arith.addf %45, %10 : vector<2x128xf32>
    %47 = vector.extract_strided_slice %46 {offsets = [0, 0], sizes = [2, 32], strides = [1, 1]} : vector<2x128xf32> to vector<2x32xf32>
    %48 = arith.negf %47 : vector<2x32xf32>
    %49 = math.exp %48 : vector<2x32xf32>
    %cst_17 = arith.constant 1.000000e+00 : f32
    %50 = vector.broadcast %cst_17 : f32 to vector<2x32xf32>
    %51 = arith.addf %50, %49 : vector<2x32xf32>
    %52 = arith.divf %50, %51 : vector<2x32xf32>
    %53 = vector.extract_strided_slice %46 {offsets = [0, 32], sizes = [2, 32], strides = [1, 1]} : vector<2x128xf32> to vector<2x32xf32>
    %54 = arith.negf %53 : vector<2x32xf32>
    %55 = math.exp %54 : vector<2x32xf32>
    %cst_18 = arith.constant 1.000000e+00 : f32
    %56 = vector.broadcast %cst_18 : f32 to vector<2x32xf32>
    %57 = arith.addf %56, %55 : vector<2x32xf32>
    %58 = arith.divf %56, %57 : vector<2x32xf32>
    %59 = vector.extract_strided_slice %46 {offsets = [0, 64], sizes = [2, 32], strides = [1, 1]} : vector<2x128xf32> to vector<2x32xf32>
    %60 = vector.extract_strided_slice %46 {offsets = [0, 96], sizes = [2, 32], strides = [1, 1]} : vector<2x128xf32> to vector<2x32xf32>
    %61 = arith.mulf %52, %60 : vector<2x32xf32>
    %62 = arith.addf %59, %61 : vector<2x32xf32>
    %63 = math.tanh %62 : vector<2x32xf32>
    %64 = arith.subf %16, %63 : vector<2x32xf32>
    %65 = arith.mulf %58, %64 : vector<2x32xf32>
    %66 = arith.addf %63, %65 : vector<2x32xf32>
    %67 = vector.extract_strided_slice %14 {offsets = [2, 0], sizes = [2, 128], strides = [1, 1]} : vector<16x128xf32> to vector<2x128xf32>
    %cst_19 = arith.constant dense<0.000000e+00> : vector<2x128xf32>
    %68 = tpu.matmul %43, %1, %cst_19 {dimension_numbers = #tpu.dot_dimension_numbers<[1], [0], [0], [1], [0, 0, 1, 1], [], []>} : vector<2x32xf32>, vector<32x128xf32>, vector<2x128xf32> -> vector<2x128xf32>
    %69 = vector.extract_strided_slice %67 {offsets = [0, 0], sizes = [2, 32], strides = [1, 1]} : vector<2x128xf32> to vector<2x32xf32>
    %70 = vector.extract_strided_slice %68 {offsets = [0, 0], sizes = [2, 32], strides = [1, 1]} : vector<2x128xf32> to vector<2x32xf32>
    %71 = arith.addf %69, %70 : vector<2x32xf32>
    %72 = arith.negf %71 : vector<2x32xf32>
    %73 = math.exp %72 : vector<2x32xf32>
    %cst_20 = arith.constant 1.000000e+00 : f32
    %74 = vector.broadcast %cst_20 : f32 to vector<2x32xf32>
    %75 = arith.addf %74, %73 : vector<2x32xf32>
    %76 = arith.divf %74, %75 : vector<2x32xf32>
    %77 = vector.extract_strided_slice %67 {offsets = [0, 32], sizes = [2, 32], strides = [1, 1]} : vector<2x128xf32> to vector<2x32xf32>
    %78 = vector.extract_strided_slice %68 {offsets = [0, 32], sizes = [2, 32], strides = [1, 1]} : vector<2x128xf32> to vector<2x32xf32>
    %79 = arith.addf %77, %78 : vector<2x32xf32>
    %80 = arith.negf %79 : vector<2x32xf32>
    %81 = math.exp %80 : vector<2x32xf32>
    %cst_21 = arith.constant 1.000000e+00 : f32
    %82 = vector.broadcast %cst_21 : f32 to vector<2x32xf32>
    %83 = arith.addf %82, %81 : vector<2x32xf32>
    %84 = arith.divf %82, %83 : vector<2x32xf32>
    %85 = vector.extract_strided_slice %67 {offsets = [0, 64], sizes = [2, 32], strides = [1, 1]} : vector<2x128xf32> to vector<2x32xf32>
    %86 = vector.extract_strided_slice %68 {offsets = [0, 64], sizes = [2, 32], strides = [1, 1]} : vector<2x128xf32> to vector<2x32xf32>
    %87 = arith.addf %86, %7 : vector<2x32xf32>
    %88 = arith.mulf %76, %87 : vector<2x32xf32>
    %89 = arith.addf %85, %88 : vector<2x32xf32>
    %90 = math.tanh %89 : vector<2x32xf32>
    %91 = arith.subf %43, %90 : vector<2x32xf32>
    %92 = arith.mulf %84, %91 : vector<2x32xf32>
    %93 = arith.addf %90, %92 : vector<2x32xf32>
    %94 = tpu.concatenate %93, %66 in 1 : vector<2x32xf32>, vector<2x32xf32> -> vector<2x64xf32>
    %cst_22 = arith.constant dense<0.000000e+00> : vector<2x128xf32>
    %95 = tpu.matmul %94, %2, %cst_22 {dimension_numbers = #tpu.dot_dimension_numbers<[1], [0], [0], [1], [0, 0, 1, 1], [], []>} : vector<2x64xf32>, vector<64x128xf32>, vector<2x128xf32> -> vector<2x128xf32>
    %96 = arith.addf %95, %10 : vector<2x128xf32>
    %97 = vector.extract_strided_slice %96 {offsets = [0, 0], sizes = [2, 32], strides = [1, 1]} : vector<2x128xf32> to vector<2x32xf32>
    %98 = arith.negf %97 : vector<2x32xf32>
    %99 = math.exp %98 : vector<2x32xf32>
    %cst_23 = arith.constant 1.000000e+00 : f32
    %100 = vector.broadcast %cst_23 : f32 to vector<2x32xf32>
    %101 = arith.addf %100, %99 : vector<2x32xf32>
    %102 = arith.divf %100, %101 : vector<2x32xf32>
    %103 = vector.extract_strided_slice %96 {offsets = [0, 32], sizes = [2, 32], strides = [1, 1]} : vector<2x128xf32> to vector<2x32xf32>
    %104 = arith.negf %103 : vector<2x32xf32>
    %105 = math.exp %104 : vector<2x32xf32>
    %cst_24 = arith.constant 1.000000e+00 : f32
    %106 = vector.broadcast %cst_24 : f32 to vector<2x32xf32>
    %107 = arith.addf %106, %105 : vector<2x32xf32>
    %108 = arith.divf %106, %107 : vector<2x32xf32>
    %109 = vector.extract_strided_slice %96 {offsets = [0, 64], sizes = [2, 32], strides = [1, 1]} : vector<2x128xf32> to vector<2x32xf32>
    %110 = vector.extract_strided_slice %96 {offsets = [0, 96], sizes = [2, 32], strides = [1, 1]} : vector<2x128xf32> to vector<2x32xf32>
    %111 = arith.mulf %102, %110 : vector<2x32xf32>
    %112 = arith.addf %109, %111 : vector<2x32xf32>
    %113 = math.tanh %112 : vector<2x32xf32>
    %114 = arith.subf %66, %113 : vector<2x32xf32>
    %115 = arith.mulf %108, %114 : vector<2x32xf32>
    %116 = arith.addf %113, %115 : vector<2x32xf32>
    %117 = vector.extract_strided_slice %14 {offsets = [4, 0], sizes = [2, 128], strides = [1, 1]} : vector<16x128xf32> to vector<2x128xf32>
    %cst_25 = arith.constant dense<0.000000e+00> : vector<2x128xf32>
    %118 = tpu.matmul %93, %1, %cst_25 {dimension_numbers = #tpu.dot_dimension_numbers<[1], [0], [0], [1], [0, 0, 1, 1], [], []>} : vector<2x32xf32>, vector<32x128xf32>, vector<2x128xf32> -> vector<2x128xf32>
    %119 = vector.extract_strided_slice %117 {offsets = [0, 0], sizes = [2, 32], strides = [1, 1]} : vector<2x128xf32> to vector<2x32xf32>
    %120 = vector.extract_strided_slice %118 {offsets = [0, 0], sizes = [2, 32], strides = [1, 1]} : vector<2x128xf32> to vector<2x32xf32>
    %121 = arith.addf %119, %120 : vector<2x32xf32>
    %122 = arith.negf %121 : vector<2x32xf32>
    %123 = math.exp %122 : vector<2x32xf32>
    %cst_26 = arith.constant 1.000000e+00 : f32
    %124 = vector.broadcast %cst_26 : f32 to vector<2x32xf32>
    %125 = arith.addf %124, %123 : vector<2x32xf32>
    %126 = arith.divf %124, %125 : vector<2x32xf32>
    %127 = vector.extract_strided_slice %117 {offsets = [0, 32], sizes = [2, 32], strides = [1, 1]} : vector<2x128xf32> to vector<2x32xf32>
    %128 = vector.extract_strided_slice %118 {offsets = [0, 32], sizes = [2, 32], strides = [1, 1]} : vector<2x128xf32> to vector<2x32xf32>
    %129 = arith.addf %127, %128 : vector<2x32xf32>
    %130 = arith.negf %129 : vector<2x32xf32>
    %131 = math.exp %130 : vector<2x32xf32>
    %cst_27 = arith.constant 1.000000e+00 : f32
    %132 = vector.broadcast %cst_27 : f32 to vector<2x32xf32>
    %133 = arith.addf %132, %131 : vector<2x32xf32>
    %134 = arith.divf %132, %133 : vector<2x32xf32>
    %135 = vector.extract_strided_slice %117 {offsets = [0, 64], sizes = [2, 32], strides = [1, 1]} : vector<2x128xf32> to vector<2x32xf32>
    %136 = vector.extract_strided_slice %118 {offsets = [0, 64], sizes = [2, 32], strides = [1, 1]} : vector<2x128xf32> to vector<2x32xf32>
    %137 = arith.addf %136, %7 : vector<2x32xf32>
    %138 = arith.mulf %126, %137 : vector<2x32xf32>
    %139 = arith.addf %135, %138 : vector<2x32xf32>
    %140 = math.tanh %139 : vector<2x32xf32>
    %141 = arith.subf %93, %140 : vector<2x32xf32>
    %142 = arith.mulf %134, %141 : vector<2x32xf32>
    %143 = arith.addf %140, %142 : vector<2x32xf32>
    %144 = tpu.concatenate %143, %116 in 1 : vector<2x32xf32>, vector<2x32xf32> -> vector<2x64xf32>
    %cst_28 = arith.constant dense<0.000000e+00> : vector<2x128xf32>
    %145 = tpu.matmul %144, %2, %cst_28 {dimension_numbers = #tpu.dot_dimension_numbers<[1], [0], [0], [1], [0, 0, 1, 1], [], []>} : vector<2x64xf32>, vector<64x128xf32>, vector<2x128xf32> -> vector<2x128xf32>
    %146 = arith.addf %145, %10 : vector<2x128xf32>
    %147 = vector.extract_strided_slice %146 {offsets = [0, 0], sizes = [2, 32], strides = [1, 1]} : vector<2x128xf32> to vector<2x32xf32>
    %148 = arith.negf %147 : vector<2x32xf32>
    %149 = math.exp %148 : vector<2x32xf32>
    %cst_29 = arith.constant 1.000000e+00 : f32
    %150 = vector.broadcast %cst_29 : f32 to vector<2x32xf32>
    %151 = arith.addf %150, %149 : vector<2x32xf32>
    %152 = arith.divf %150, %151 : vector<2x32xf32>
    %153 = vector.extract_strided_slice %146 {offsets = [0, 32], sizes = [2, 32], strides = [1, 1]} : vector<2x128xf32> to vector<2x32xf32>
    %154 = arith.negf %153 : vector<2x32xf32>
    %155 = math.exp %154 : vector<2x32xf32>
    %cst_30 = arith.constant 1.000000e+00 : f32
    %156 = vector.broadcast %cst_30 : f32 to vector<2x32xf32>
    %157 = arith.addf %156, %155 : vector<2x32xf32>
    %158 = arith.divf %156, %157 : vector<2x32xf32>
    %159 = vector.extract_strided_slice %146 {offsets = [0, 64], sizes = [2, 32], strides = [1, 1]} : vector<2x128xf32> to vector<2x32xf32>
    %160 = vector.extract_strided_slice %146 {offsets = [0, 96], sizes = [2, 32], strides = [1, 1]} : vector<2x128xf32> to vector<2x32xf32>
    %161 = arith.mulf %152, %160 : vector<2x32xf32>
    %162 = arith.addf %159, %161 : vector<2x32xf32>
    %163 = math.tanh %162 : vector<2x32xf32>
    %164 = arith.subf %116, %163 : vector<2x32xf32>
    %165 = arith.mulf %158, %164 : vector<2x32xf32>
    %166 = arith.addf %163, %165 : vector<2x32xf32>
    %167 = vector.extract_strided_slice %14 {offsets = [6, 0], sizes = [2, 128], strides = [1, 1]} : vector<16x128xf32> to vector<2x128xf32>
    %cst_31 = arith.constant dense<0.000000e+00> : vector<2x128xf32>
    %168 = tpu.matmul %143, %1, %cst_31 {dimension_numbers = #tpu.dot_dimension_numbers<[1], [0], [0], [1], [0, 0, 1, 1], [], []>} : vector<2x32xf32>, vector<32x128xf32>, vector<2x128xf32> -> vector<2x128xf32>
    %169 = vector.extract_strided_slice %167 {offsets = [0, 0], sizes = [2, 32], strides = [1, 1]} : vector<2x128xf32> to vector<2x32xf32>
    %170 = vector.extract_strided_slice %168 {offsets = [0, 0], sizes = [2, 32], strides = [1, 1]} : vector<2x128xf32> to vector<2x32xf32>
    %171 = arith.addf %169, %170 : vector<2x32xf32>
    %172 = arith.negf %171 : vector<2x32xf32>
    %173 = math.exp %172 : vector<2x32xf32>
    %cst_32 = arith.constant 1.000000e+00 : f32
    %174 = vector.broadcast %cst_32 : f32 to vector<2x32xf32>
    %175 = arith.addf %174, %173 : vector<2x32xf32>
    %176 = arith.divf %174, %175 : vector<2x32xf32>
    %177 = vector.extract_strided_slice %167 {offsets = [0, 32], sizes = [2, 32], strides = [1, 1]} : vector<2x128xf32> to vector<2x32xf32>
    %178 = vector.extract_strided_slice %168 {offsets = [0, 32], sizes = [2, 32], strides = [1, 1]} : vector<2x128xf32> to vector<2x32xf32>
    %179 = arith.addf %177, %178 : vector<2x32xf32>
    %180 = arith.negf %179 : vector<2x32xf32>
    %181 = math.exp %180 : vector<2x32xf32>
    %cst_33 = arith.constant 1.000000e+00 : f32
    %182 = vector.broadcast %cst_33 : f32 to vector<2x32xf32>
    %183 = arith.addf %182, %181 : vector<2x32xf32>
    %184 = arith.divf %182, %183 : vector<2x32xf32>
    %185 = vector.extract_strided_slice %167 {offsets = [0, 64], sizes = [2, 32], strides = [1, 1]} : vector<2x128xf32> to vector<2x32xf32>
    %186 = vector.extract_strided_slice %168 {offsets = [0, 64], sizes = [2, 32], strides = [1, 1]} : vector<2x128xf32> to vector<2x32xf32>
    %187 = arith.addf %186, %7 : vector<2x32xf32>
    %188 = arith.mulf %176, %187 : vector<2x32xf32>
    %189 = arith.addf %185, %188 : vector<2x32xf32>
    %190 = math.tanh %189 : vector<2x32xf32>
    %191 = arith.subf %143, %190 : vector<2x32xf32>
    %192 = arith.mulf %184, %191 : vector<2x32xf32>
    %193 = arith.addf %190, %192 : vector<2x32xf32>
    %194 = tpu.concatenate %193, %166 in 1 : vector<2x32xf32>, vector<2x32xf32> -> vector<2x64xf32>
    %cst_34 = arith.constant dense<0.000000e+00> : vector<2x128xf32>
    %195 = tpu.matmul %194, %2, %cst_34 {dimension_numbers = #tpu.dot_dimension_numbers<[1], [0], [0], [1], [0, 0, 1, 1], [], []>} : vector<2x64xf32>, vector<64x128xf32>, vector<2x128xf32> -> vector<2x128xf32>
    %196 = arith.addf %195, %10 : vector<2x128xf32>
    %197 = vector.extract_strided_slice %196 {offsets = [0, 0], sizes = [2, 32], strides = [1, 1]} : vector<2x128xf32> to vector<2x32xf32>
    %198 = arith.negf %197 : vector<2x32xf32>
    %199 = math.exp %198 : vector<2x32xf32>
    %cst_35 = arith.constant 1.000000e+00 : f32
    %200 = vector.broadcast %cst_35 : f32 to vector<2x32xf32>
    %201 = arith.addf %200, %199 : vector<2x32xf32>
    %202 = arith.divf %200, %201 : vector<2x32xf32>
    %203 = vector.extract_strided_slice %196 {offsets = [0, 32], sizes = [2, 32], strides = [1, 1]} : vector<2x128xf32> to vector<2x32xf32>
    %204 = arith.negf %203 : vector<2x32xf32>
    %205 = math.exp %204 : vector<2x32xf32>
    %cst_36 = arith.constant 1.000000e+00 : f32
    %206 = vector.broadcast %cst_36 : f32 to vector<2x32xf32>
    %207 = arith.addf %206, %205 : vector<2x32xf32>
    %208 = arith.divf %206, %207 : vector<2x32xf32>
    %209 = vector.extract_strided_slice %196 {offsets = [0, 64], sizes = [2, 32], strides = [1, 1]} : vector<2x128xf32> to vector<2x32xf32>
    %210 = vector.extract_strided_slice %196 {offsets = [0, 96], sizes = [2, 32], strides = [1, 1]} : vector<2x128xf32> to vector<2x32xf32>
    %211 = arith.mulf %202, %210 : vector<2x32xf32>
    %212 = arith.addf %209, %211 : vector<2x32xf32>
    %213 = math.tanh %212 : vector<2x32xf32>
    %214 = arith.subf %166, %213 : vector<2x32xf32>
    %215 = arith.mulf %208, %214 : vector<2x32xf32>
    %216 = arith.addf %213, %215 : vector<2x32xf32>
    %217 = vector.extract_strided_slice %14 {offsets = [8, 0], sizes = [2, 128], strides = [1, 1]} : vector<16x128xf32> to vector<2x128xf32>
    %cst_37 = arith.constant dense<0.000000e+00> : vector<2x128xf32>
    %218 = tpu.matmul %193, %1, %cst_37 {dimension_numbers = #tpu.dot_dimension_numbers<[1], [0], [0], [1], [0, 0, 1, 1], [], []>} : vector<2x32xf32>, vector<32x128xf32>, vector<2x128xf32> -> vector<2x128xf32>
    %219 = vector.extract_strided_slice %217 {offsets = [0, 0], sizes = [2, 32], strides = [1, 1]} : vector<2x128xf32> to vector<2x32xf32>
    %220 = vector.extract_strided_slice %218 {offsets = [0, 0], sizes = [2, 32], strides = [1, 1]} : vector<2x128xf32> to vector<2x32xf32>
    %221 = arith.addf %219, %220 : vector<2x32xf32>
    %222 = arith.negf %221 : vector<2x32xf32>
    %223 = math.exp %222 : vector<2x32xf32>
    %cst_38 = arith.constant 1.000000e+00 : f32
    %224 = vector.broadcast %cst_38 : f32 to vector<2x32xf32>
    %225 = arith.addf %224, %223 : vector<2x32xf32>
    %226 = arith.divf %224, %225 : vector<2x32xf32>
    %227 = vector.extract_strided_slice %217 {offsets = [0, 32], sizes = [2, 32], strides = [1, 1]} : vector<2x128xf32> to vector<2x32xf32>
    %228 = vector.extract_strided_slice %218 {offsets = [0, 32], sizes = [2, 32], strides = [1, 1]} : vector<2x128xf32> to vector<2x32xf32>
    %229 = arith.addf %227, %228 : vector<2x32xf32>
    %230 = arith.negf %229 : vector<2x32xf32>
    %231 = math.exp %230 : vector<2x32xf32>
    %cst_39 = arith.constant 1.000000e+00 : f32
    %232 = vector.broadcast %cst_39 : f32 to vector<2x32xf32>
    %233 = arith.addf %232, %231 : vector<2x32xf32>
    %234 = arith.divf %232, %233 : vector<2x32xf32>
    %235 = vector.extract_strided_slice %217 {offsets = [0, 64], sizes = [2, 32], strides = [1, 1]} : vector<2x128xf32> to vector<2x32xf32>
    %236 = vector.extract_strided_slice %218 {offsets = [0, 64], sizes = [2, 32], strides = [1, 1]} : vector<2x128xf32> to vector<2x32xf32>
    %237 = arith.addf %236, %7 : vector<2x32xf32>
    %238 = arith.mulf %226, %237 : vector<2x32xf32>
    %239 = arith.addf %235, %238 : vector<2x32xf32>
    %240 = math.tanh %239 : vector<2x32xf32>
    %241 = arith.subf %193, %240 : vector<2x32xf32>
    %242 = arith.mulf %234, %241 : vector<2x32xf32>
    %243 = arith.addf %240, %242 : vector<2x32xf32>
    %244 = tpu.concatenate %243, %216 in 1 : vector<2x32xf32>, vector<2x32xf32> -> vector<2x64xf32>
    %cst_40 = arith.constant dense<0.000000e+00> : vector<2x128xf32>
    %245 = tpu.matmul %244, %2, %cst_40 {dimension_numbers = #tpu.dot_dimension_numbers<[1], [0], [0], [1], [0, 0, 1, 1], [], []>} : vector<2x64xf32>, vector<64x128xf32>, vector<2x128xf32> -> vector<2x128xf32>
    %246 = arith.addf %245, %10 : vector<2x128xf32>
    %247 = vector.extract_strided_slice %246 {offsets = [0, 0], sizes = [2, 32], strides = [1, 1]} : vector<2x128xf32> to vector<2x32xf32>
    %248 = arith.negf %247 : vector<2x32xf32>
    %249 = math.exp %248 : vector<2x32xf32>
    %cst_41 = arith.constant 1.000000e+00 : f32
    %250 = vector.broadcast %cst_41 : f32 to vector<2x32xf32>
    %251 = arith.addf %250, %249 : vector<2x32xf32>
    %252 = arith.divf %250, %251 : vector<2x32xf32>
    %253 = vector.extract_strided_slice %246 {offsets = [0, 32], sizes = [2, 32], strides = [1, 1]} : vector<2x128xf32> to vector<2x32xf32>
    %254 = arith.negf %253 : vector<2x32xf32>
    %255 = math.exp %254 : vector<2x32xf32>
    %cst_42 = arith.constant 1.000000e+00 : f32
    %256 = vector.broadcast %cst_42 : f32 to vector<2x32xf32>
    %257 = arith.addf %256, %255 : vector<2x32xf32>
    %258 = arith.divf %256, %257 : vector<2x32xf32>
    %259 = vector.extract_strided_slice %246 {offsets = [0, 64], sizes = [2, 32], strides = [1, 1]} : vector<2x128xf32> to vector<2x32xf32>
    %260 = vector.extract_strided_slice %246 {offsets = [0, 96], sizes = [2, 32], strides = [1, 1]} : vector<2x128xf32> to vector<2x32xf32>
    %261 = arith.mulf %252, %260 : vector<2x32xf32>
    %262 = arith.addf %259, %261 : vector<2x32xf32>
    %263 = math.tanh %262 : vector<2x32xf32>
    %264 = arith.subf %216, %263 : vector<2x32xf32>
    %265 = arith.mulf %258, %264 : vector<2x32xf32>
    %266 = arith.addf %263, %265 : vector<2x32xf32>
    %267 = vector.extract_strided_slice %14 {offsets = [10, 0], sizes = [2, 128], strides = [1, 1]} : vector<16x128xf32> to vector<2x128xf32>
    %cst_43 = arith.constant dense<0.000000e+00> : vector<2x128xf32>
    %268 = tpu.matmul %243, %1, %cst_43 {dimension_numbers = #tpu.dot_dimension_numbers<[1], [0], [0], [1], [0, 0, 1, 1], [], []>} : vector<2x32xf32>, vector<32x128xf32>, vector<2x128xf32> -> vector<2x128xf32>
    %269 = vector.extract_strided_slice %267 {offsets = [0, 0], sizes = [2, 32], strides = [1, 1]} : vector<2x128xf32> to vector<2x32xf32>
    %270 = vector.extract_strided_slice %268 {offsets = [0, 0], sizes = [2, 32], strides = [1, 1]} : vector<2x128xf32> to vector<2x32xf32>
    %271 = arith.addf %269, %270 : vector<2x32xf32>
    %272 = arith.negf %271 : vector<2x32xf32>
    %273 = math.exp %272 : vector<2x32xf32>
    %cst_44 = arith.constant 1.000000e+00 : f32
    %274 = vector.broadcast %cst_44 : f32 to vector<2x32xf32>
    %275 = arith.addf %274, %273 : vector<2x32xf32>
    %276 = arith.divf %274, %275 : vector<2x32xf32>
    %277 = vector.extract_strided_slice %267 {offsets = [0, 32], sizes = [2, 32], strides = [1, 1]} : vector<2x128xf32> to vector<2x32xf32>
    %278 = vector.extract_strided_slice %268 {offsets = [0, 32], sizes = [2, 32], strides = [1, 1]} : vector<2x128xf32> to vector<2x32xf32>
    %279 = arith.addf %277, %278 : vector<2x32xf32>
    %280 = arith.negf %279 : vector<2x32xf32>
    %281 = math.exp %280 : vector<2x32xf32>
    %cst_45 = arith.constant 1.000000e+00 : f32
    %282 = vector.broadcast %cst_45 : f32 to vector<2x32xf32>
    %283 = arith.addf %282, %281 : vector<2x32xf32>
    %284 = arith.divf %282, %283 : vector<2x32xf32>
    %285 = vector.extract_strided_slice %267 {offsets = [0, 64], sizes = [2, 32], strides = [1, 1]} : vector<2x128xf32> to vector<2x32xf32>
    %286 = vector.extract_strided_slice %268 {offsets = [0, 64], sizes = [2, 32], strides = [1, 1]} : vector<2x128xf32> to vector<2x32xf32>
    %287 = arith.addf %286, %7 : vector<2x32xf32>
    %288 = arith.mulf %276, %287 : vector<2x32xf32>
    %289 = arith.addf %285, %288 : vector<2x32xf32>
    %290 = math.tanh %289 : vector<2x32xf32>
    %291 = arith.subf %243, %290 : vector<2x32xf32>
    %292 = arith.mulf %284, %291 : vector<2x32xf32>
    %293 = arith.addf %290, %292 : vector<2x32xf32>
    %294 = tpu.concatenate %293, %266 in 1 : vector<2x32xf32>, vector<2x32xf32> -> vector<2x64xf32>
    %cst_46 = arith.constant dense<0.000000e+00> : vector<2x128xf32>
    %295 = tpu.matmul %294, %2, %cst_46 {dimension_numbers = #tpu.dot_dimension_numbers<[1], [0], [0], [1], [0, 0, 1, 1], [], []>} : vector<2x64xf32>, vector<64x128xf32>, vector<2x128xf32> -> vector<2x128xf32>
    %296 = arith.addf %295, %10 : vector<2x128xf32>
    %297 = vector.extract_strided_slice %296 {offsets = [0, 0], sizes = [2, 32], strides = [1, 1]} : vector<2x128xf32> to vector<2x32xf32>
    %298 = arith.negf %297 : vector<2x32xf32>
    %299 = math.exp %298 : vector<2x32xf32>
    %cst_47 = arith.constant 1.000000e+00 : f32
    %300 = vector.broadcast %cst_47 : f32 to vector<2x32xf32>
    %301 = arith.addf %300, %299 : vector<2x32xf32>
    %302 = arith.divf %300, %301 : vector<2x32xf32>
    %303 = vector.extract_strided_slice %296 {offsets = [0, 32], sizes = [2, 32], strides = [1, 1]} : vector<2x128xf32> to vector<2x32xf32>
    %304 = arith.negf %303 : vector<2x32xf32>
    %305 = math.exp %304 : vector<2x32xf32>
    %cst_48 = arith.constant 1.000000e+00 : f32
    %306 = vector.broadcast %cst_48 : f32 to vector<2x32xf32>
    %307 = arith.addf %306, %305 : vector<2x32xf32>
    %308 = arith.divf %306, %307 : vector<2x32xf32>
    %309 = vector.extract_strided_slice %296 {offsets = [0, 64], sizes = [2, 32], strides = [1, 1]} : vector<2x128xf32> to vector<2x32xf32>
    %310 = vector.extract_strided_slice %296 {offsets = [0, 96], sizes = [2, 32], strides = [1, 1]} : vector<2x128xf32> to vector<2x32xf32>
    %311 = arith.mulf %302, %310 : vector<2x32xf32>
    %312 = arith.addf %309, %311 : vector<2x32xf32>
    %313 = math.tanh %312 : vector<2x32xf32>
    %314 = arith.subf %266, %313 : vector<2x32xf32>
    %315 = arith.mulf %308, %314 : vector<2x32xf32>
    %316 = arith.addf %313, %315 : vector<2x32xf32>
    %317 = vector.extract_strided_slice %14 {offsets = [12, 0], sizes = [2, 128], strides = [1, 1]} : vector<16x128xf32> to vector<2x128xf32>
    %cst_49 = arith.constant dense<0.000000e+00> : vector<2x128xf32>
    %318 = tpu.matmul %293, %1, %cst_49 {dimension_numbers = #tpu.dot_dimension_numbers<[1], [0], [0], [1], [0, 0, 1, 1], [], []>} : vector<2x32xf32>, vector<32x128xf32>, vector<2x128xf32> -> vector<2x128xf32>
    %319 = vector.extract_strided_slice %317 {offsets = [0, 0], sizes = [2, 32], strides = [1, 1]} : vector<2x128xf32> to vector<2x32xf32>
    %320 = vector.extract_strided_slice %318 {offsets = [0, 0], sizes = [2, 32], strides = [1, 1]} : vector<2x128xf32> to vector<2x32xf32>
    %321 = arith.addf %319, %320 : vector<2x32xf32>
    %322 = arith.negf %321 : vector<2x32xf32>
    %323 = math.exp %322 : vector<2x32xf32>
    %cst_50 = arith.constant 1.000000e+00 : f32
    %324 = vector.broadcast %cst_50 : f32 to vector<2x32xf32>
    %325 = arith.addf %324, %323 : vector<2x32xf32>
    %326 = arith.divf %324, %325 : vector<2x32xf32>
    %327 = vector.extract_strided_slice %317 {offsets = [0, 32], sizes = [2, 32], strides = [1, 1]} : vector<2x128xf32> to vector<2x32xf32>
    %328 = vector.extract_strided_slice %318 {offsets = [0, 32], sizes = [2, 32], strides = [1, 1]} : vector<2x128xf32> to vector<2x32xf32>
    %329 = arith.addf %327, %328 : vector<2x32xf32>
    %330 = arith.negf %329 : vector<2x32xf32>
    %331 = math.exp %330 : vector<2x32xf32>
    %cst_51 = arith.constant 1.000000e+00 : f32
    %332 = vector.broadcast %cst_51 : f32 to vector<2x32xf32>
    %333 = arith.addf %332, %331 : vector<2x32xf32>
    %334 = arith.divf %332, %333 : vector<2x32xf32>
    %335 = vector.extract_strided_slice %317 {offsets = [0, 64], sizes = [2, 32], strides = [1, 1]} : vector<2x128xf32> to vector<2x32xf32>
    %336 = vector.extract_strided_slice %318 {offsets = [0, 64], sizes = [2, 32], strides = [1, 1]} : vector<2x128xf32> to vector<2x32xf32>
    %337 = arith.addf %336, %7 : vector<2x32xf32>
    %338 = arith.mulf %326, %337 : vector<2x32xf32>
    %339 = arith.addf %335, %338 : vector<2x32xf32>
    %340 = math.tanh %339 : vector<2x32xf32>
    %341 = arith.subf %293, %340 : vector<2x32xf32>
    %342 = arith.mulf %334, %341 : vector<2x32xf32>
    %343 = arith.addf %340, %342 : vector<2x32xf32>
    %344 = tpu.concatenate %343, %316 in 1 : vector<2x32xf32>, vector<2x32xf32> -> vector<2x64xf32>
    %cst_52 = arith.constant dense<0.000000e+00> : vector<2x128xf32>
    %345 = tpu.matmul %344, %2, %cst_52 {dimension_numbers = #tpu.dot_dimension_numbers<[1], [0], [0], [1], [0, 0, 1, 1], [], []>} : vector<2x64xf32>, vector<64x128xf32>, vector<2x128xf32> -> vector<2x128xf32>
    %346 = arith.addf %345, %10 : vector<2x128xf32>
    %347 = vector.extract_strided_slice %346 {offsets = [0, 0], sizes = [2, 32], strides = [1, 1]} : vector<2x128xf32> to vector<2x32xf32>
    %348 = arith.negf %347 : vector<2x32xf32>
    %349 = math.exp %348 : vector<2x32xf32>
    %cst_53 = arith.constant 1.000000e+00 : f32
    %350 = vector.broadcast %cst_53 : f32 to vector<2x32xf32>
    %351 = arith.addf %350, %349 : vector<2x32xf32>
    %352 = arith.divf %350, %351 : vector<2x32xf32>
    %353 = vector.extract_strided_slice %346 {offsets = [0, 32], sizes = [2, 32], strides = [1, 1]} : vector<2x128xf32> to vector<2x32xf32>
    %354 = arith.negf %353 : vector<2x32xf32>
    %355 = math.exp %354 : vector<2x32xf32>
    %cst_54 = arith.constant 1.000000e+00 : f32
    %356 = vector.broadcast %cst_54 : f32 to vector<2x32xf32>
    %357 = arith.addf %356, %355 : vector<2x32xf32>
    %358 = arith.divf %356, %357 : vector<2x32xf32>
    %359 = vector.extract_strided_slice %346 {offsets = [0, 64], sizes = [2, 32], strides = [1, 1]} : vector<2x128xf32> to vector<2x32xf32>
    %360 = vector.extract_strided_slice %346 {offsets = [0, 96], sizes = [2, 32], strides = [1, 1]} : vector<2x128xf32> to vector<2x32xf32>
    %361 = arith.mulf %352, %360 : vector<2x32xf32>
    %362 = arith.addf %359, %361 : vector<2x32xf32>
    %363 = math.tanh %362 : vector<2x32xf32>
    %364 = arith.subf %316, %363 : vector<2x32xf32>
    %365 = arith.mulf %358, %364 : vector<2x32xf32>
    %366 = arith.addf %363, %365 : vector<2x32xf32>
    %367 = vector.extract_strided_slice %14 {offsets = [14, 0], sizes = [2, 128], strides = [1, 1]} : vector<16x128xf32> to vector<2x128xf32>
    %cst_55 = arith.constant dense<0.000000e+00> : vector<2x128xf32>
    %368 = tpu.matmul %343, %1, %cst_55 {dimension_numbers = #tpu.dot_dimension_numbers<[1], [0], [0], [1], [0, 0, 1, 1], [], []>} : vector<2x32xf32>, vector<32x128xf32>, vector<2x128xf32> -> vector<2x128xf32>
    %369 = vector.extract_strided_slice %367 {offsets = [0, 0], sizes = [2, 32], strides = [1, 1]} : vector<2x128xf32> to vector<2x32xf32>
    %370 = vector.extract_strided_slice %368 {offsets = [0, 0], sizes = [2, 32], strides = [1, 1]} : vector<2x128xf32> to vector<2x32xf32>
    %371 = arith.addf %369, %370 : vector<2x32xf32>
    %372 = arith.negf %371 : vector<2x32xf32>
    %373 = math.exp %372 : vector<2x32xf32>
    %cst_56 = arith.constant 1.000000e+00 : f32
    %374 = vector.broadcast %cst_56 : f32 to vector<2x32xf32>
    %375 = arith.addf %374, %373 : vector<2x32xf32>
    %376 = arith.divf %374, %375 : vector<2x32xf32>
    %377 = vector.extract_strided_slice %367 {offsets = [0, 32], sizes = [2, 32], strides = [1, 1]} : vector<2x128xf32> to vector<2x32xf32>
    %378 = vector.extract_strided_slice %368 {offsets = [0, 32], sizes = [2, 32], strides = [1, 1]} : vector<2x128xf32> to vector<2x32xf32>
    %379 = arith.addf %377, %378 : vector<2x32xf32>
    %380 = arith.negf %379 : vector<2x32xf32>
    %381 = math.exp %380 : vector<2x32xf32>
    %cst_57 = arith.constant 1.000000e+00 : f32
    %382 = vector.broadcast %cst_57 : f32 to vector<2x32xf32>
    %383 = arith.addf %382, %381 : vector<2x32xf32>
    %384 = arith.divf %382, %383 : vector<2x32xf32>
    %385 = vector.extract_strided_slice %367 {offsets = [0, 64], sizes = [2, 32], strides = [1, 1]} : vector<2x128xf32> to vector<2x32xf32>
    %386 = vector.extract_strided_slice %368 {offsets = [0, 64], sizes = [2, 32], strides = [1, 1]} : vector<2x128xf32> to vector<2x32xf32>
    %387 = arith.addf %386, %7 : vector<2x32xf32>
    %388 = arith.mulf %376, %387 : vector<2x32xf32>
    %389 = arith.addf %385, %388 : vector<2x32xf32>
    %390 = math.tanh %389 : vector<2x32xf32>
    %391 = arith.subf %343, %390 : vector<2x32xf32>
    %392 = arith.mulf %384, %391 : vector<2x32xf32>
    %393 = arith.addf %390, %392 : vector<2x32xf32>
    %394 = tpu.concatenate %393, %366 in 1 : vector<2x32xf32>, vector<2x32xf32> -> vector<2x64xf32>
    %cst_58 = arith.constant dense<0.000000e+00> : vector<2x128xf32>
    %395 = tpu.matmul %394, %2, %cst_58 {dimension_numbers = #tpu.dot_dimension_numbers<[1], [0], [0], [1], [0, 0, 1, 1], [], []>} : vector<2x64xf32>, vector<64x128xf32>, vector<2x128xf32> -> vector<2x128xf32>
    %396 = arith.addf %395, %10 : vector<2x128xf32>
    %397 = vector.extract_strided_slice %396 {offsets = [0, 0], sizes = [2, 32], strides = [1, 1]} : vector<2x128xf32> to vector<2x32xf32>
    %398 = arith.negf %397 : vector<2x32xf32>
    %399 = math.exp %398 : vector<2x32xf32>
    %cst_59 = arith.constant 1.000000e+00 : f32
    %400 = vector.broadcast %cst_59 : f32 to vector<2x32xf32>
    %401 = arith.addf %400, %399 : vector<2x32xf32>
    %402 = arith.divf %400, %401 : vector<2x32xf32>
    %403 = vector.extract_strided_slice %396 {offsets = [0, 32], sizes = [2, 32], strides = [1, 1]} : vector<2x128xf32> to vector<2x32xf32>
    %404 = arith.negf %403 : vector<2x32xf32>
    %405 = math.exp %404 : vector<2x32xf32>
    %cst_60 = arith.constant 1.000000e+00 : f32
    %406 = vector.broadcast %cst_60 : f32 to vector<2x32xf32>
    %407 = arith.addf %406, %405 : vector<2x32xf32>
    %408 = arith.divf %406, %407 : vector<2x32xf32>
    %409 = vector.extract_strided_slice %396 {offsets = [0, 64], sizes = [2, 32], strides = [1, 1]} : vector<2x128xf32> to vector<2x32xf32>
    %410 = vector.extract_strided_slice %396 {offsets = [0, 96], sizes = [2, 32], strides = [1, 1]} : vector<2x128xf32> to vector<2x32xf32>
    %411 = arith.mulf %402, %410 : vector<2x32xf32>
    %412 = arith.addf %409, %411 : vector<2x32xf32>
    %413 = math.tanh %412 : vector<2x32xf32>
    %414 = arith.subf %366, %413 : vector<2x32xf32>
    %415 = arith.mulf %408, %414 : vector<2x32xf32>
    %416 = arith.addf %413, %415 : vector<2x32xf32>
    %417 = tpu.concatenate %66, %116, %166, %216, %266, %316, %366, %416 in 0 : vector<2x32xf32>, vector<2x32xf32>, vector<2x32xf32>, vector<2x32xf32>, vector<2x32xf32>, vector<2x32xf32>, vector<2x32xf32>, vector<2x32xf32> -> vector<16x32xf32>
    %cst_61 = arith.constant dense<0.000000e+00> : vector<16x128xf32>
    %418 = tpu.matmul %417, %3, %cst_61 {dimension_numbers = #tpu.dot_dimension_numbers<[1], [0], [0], [1], [0, 0, 1, 1], [], []>} : vector<16x32xf32>, vector<32x128xf32>, vector<16x128xf32> -> vector<16x128xf32>
    %419 = vector.broadcast %11 : vector<1x128xf32> to vector<16x128xf32>
    %420 = arith.addf %418, %419 : vector<16x128xf32>
    %cst_62 = arith.constant 0.000000e+00 : f32
    %421 = vector.broadcast %cst_62 : f32 to vector<16x128xf32>
    %422 = arith.maximumf %420, %421 : vector<16x128xf32>
    %cst_63 = arith.constant dense<0.000000e+00> : vector<16x128xf32>
    %423 = tpu.matmul %422, %4, %cst_63 {dimension_numbers = #tpu.dot_dimension_numbers<[1], [0], [0], [1], [0, 0, 1, 1], [], []>} : vector<16x128xf32>, vector<128x128xf32>, vector<16x128xf32> -> vector<16x128xf32>
    %424 = vector.broadcast %12 : vector<1x128xf32> to vector<16x128xf32>
    %425 = arith.addf %423, %424 : vector<16x128xf32>
    %cst_64 = arith.constant 0.000000e+00 : f32
    %426 = vector.broadcast %cst_64 : f32 to vector<4x32xf32>
    %427 = tpu.concatenate %393, %416, %426 in 0 : vector<2x32xf32>, vector<2x32xf32>, vector<4x32xf32> -> vector<8x32xf32>
    %cst_65 = arith.constant 0.000000e+00 : f32
    %428 = vector.broadcast %cst_65 : f32 to vector<8x96xf32>
    %429 = tpu.concatenate %427, %428 in 1 : vector<8x32xf32>, vector<8x96xf32> -> vector<8x128xf32>
    %430 = tpu.concatenate %425, %429 in 0 : vector<16x128xf32>, vector<8x128xf32> -> vector<24x128xf32>
    %c0_66 = arith.constant 0 : index
    %c0_67 = arith.constant 0 : index
    %431 = vector.load %arg2[%c0_66, %c0_67] : memref<24x128xf32, #tpu.memory_space<vmem>>, vector<24x128xf32>
    tpu.vector_store %arg2[%c0_66, %c0_67], %430 {strides = array<i32>} : memref<24x128xf32, #tpu.memory_space<vmem>>, vector<24x128xf32>,
    return
  }
}

</mosaic_0001>

<llo_original>
// kernel: pgrnn_forward.1
$region0: #{pgrnn_forward.1}
  #allocation0 [shape = 'u32[]', space=smem, size = 0x4, offset = 0x4, fixed_abs, tag = 'smem constant byte address 0x4 - core index']
  #allocation1 [shape = 'u32[144,128]{1,0:T(1,128)}', space=vmem, size = 0x12000, scoped, tag = 'internal scratch']
  %s0 = inlined_call_operand.vmem [shape: f32[16,8], index: 0, kind: input, shape index: {}]
  %s1 = inlined_call_operand.hbm [shape: f32[272,128], index: 1, kind: input, shape index: {}]
  %s2 = inlined_call_operand.vmem [shape: f32[24,128], index: 2, kind: output, shape index: {}]
  %s3 = sld [smem:[#allocation0]]
  $region22: #{pgrnn_forward.1} parent=0
    _
  %s5 = ssub.s32 1, %s3
  %s6 = scalar_select 0, %s5, %s3
  $region1: #{pgrnn_forward.1} parent=0
    #allocation2 [shape = 'u8[139264]{0}', space=vmem, size = 0x22000, scoped, tag = 'input window, operand 1, single buffered']
    #allocation3 [shape = 's32[1]{0}', space=sflag, size = 0x4, scoped, tag = 'scoped memory for pgrnn_forward.1']
    %7 = vsyncpa [#allocation3], 0
    // Predicated region
    $region2: #{pgrnn_forward.1} parent=1 // pred_check
      _
    $region3: #{pgrnn_forward.1} parent=1 // pred_check_branch
      %9 = sbr.rel (0) target = $region5
    $region4: #{pgrnn_forward.1} parent=1 // pred_region
      _
    $region5: #{pgrnn_forward.1} parent=1 // pred_fallthru
      _
    // Predicated region
    $region6: #{pgrnn_forward.1} parent=1 // pred_check
      _
    $region7: #{pgrnn_forward.1} parent=1 // pred_check_branch
      %11 = sbr.rel (0) target = $region9
    $region8: #{pgrnn_forward.1} parent=1 // pred_region
      %s13 = ssub.s32 4352, 4352
      %14 = vsyncadd [#allocation3], %s13
      %s15 = sshll.u32 [#allocation2], 4
      %s16 = int_to_ptr.vmem [resolvable:$true] %s15
      %21 = dma.hbm_to_vmem [thread:$0]  %s1, 4352, %s16, [#allocation3], 128, 128, 8
    $region9: #{pgrnn_forward.1} parent=1 // pred_fallthru
      _
    // Predicated region
    $region10: #{pgrnn_forward.1} parent=1 // pred_check
      _
    $region11: #{pgrnn_forward.1} parent=1 // pred_check_branch
      %23 = sbr.rel (0) target = $region13
    $region12: #{pgrnn_forward.1} parent=1 // pred_region
      %24 = dma.done [#allocation3], 4352
    $region13: #{pgrnn_forward.1} parent=1 // pred_fallthru
      _
    %v25 = vld [vmem:[#allocation2] sm:$0xff]
    %v26 = vld [vmem:[#allocation2 + $0x8] sm:$0xff]
    %v27 = vld [vmem:[#allocation2 + $0x10] sm:$0xff]
    %v28 = vld [vmem:[#allocation2 + $0x18] sm:$0xff]
    %v29 = vld [vmem:[#allocation2 + $0x20] sm:$0xff]
    %v30 = vld [vmem:[#allocation2 + $0x28] sm:$0xff]
    %v31 = vld [vmem:[#allocation2 + $0x30] sm:$0xff]
    %v32 = vld [vmem:[#allocation2 + $0x38] sm:$0xff]
    %v33 = vld [vmem:[#allocation2 + $0x40] sm:$0xff]
    %v34 = vld [vmem:[#allocation2 + $0x48] sm:$0xff]
    %v35 = vld [vmem:[#allocation2 + $0x50] sm:$0xff]
    %v36 = vld [vmem:[#allocation2 + $0x58] sm:$0xff]
    %v37 = vld [vmem:[#allocation2 + $0x60] sm:$0xff]
    %v38 = vld [vmem:[#allocation2 + $0x68] sm:$0xff]
    %v39 = vld [vmem:[#allocation2 + $0x70] sm:$0xff]
    %v40 = vld [vmem:[#allocation2 + $0x78] sm:$0xff]
    %v41 = vld [vmem:[#allocation2 + $0x80] sm:$0xff]
    %v42 = vld [vmem:[#allocation2 + $0x88] sm:$0xff]
    %v43 = vld [vmem:[#allocation2 + $0x90] sm:$0xff]
    %v44 = vld [vmem:[#allocation2 + $0x98] sm:$0xff]
    %v45 = vld [vmem:[#allocation2 + $0xa0] sm:$0xff]
    %v46 = vld [vmem:[#allocation2 + $0xa8] sm:$0xff]
    %v47 = vld [vmem:[#allocation2 + $0xb0] sm:$0xff]
    %v48 = vld [vmem:[#allocation2 + $0xb8] sm:$0xff]
    %v49 = vld [vmem:[#allocation2 + $0xc0] sm:$0xff]
    %v50 = vld [vmem:[#allocation2 + $0xc8] sm:$0xff]
    %v51 = vld [vmem:[#allocation2 + $0xd0] sm:$0xff]
    %v52 = vld [vmem:[#allocation2 + $0xd8] sm:$0xff]
    %v53 = vld [vmem:[#allocation2 + $0xe0] sm:$0xff]
    %v54 = vld [vmem:[#allocation2 + $0xe8] sm:$0xff]
    %v55 = vld [vmem:[#allocation2 + $0xf0] sm:$0xff]
    %v56 = vld [vmem:[#allocation2 + $0xf8] sm:$0xff]
    %v57 = vld [vmem:[#allocation2 + $0x100] sm:$0xff]
    %v58 = vld [vmem:[#allocation2 + $0x108] sm:$0x1]
    %v59 = vlaneseq
    %v60 = vshrl.u32 %v59, 7
    %v61 = vsub.s32 0, %v60
    %v62 = vrot.slane %v58, %v61
    %v63 = vld [vmem:[#allocation2 + $0x109] sm:$0x1]
    %v64 = vlaneseq
    %v65 = vshrl.u32 %v64, 7
    %v66 = vsub.s32 0, %v65
    %v67 = vrot.slane %v63, %v66
    %v68 = vld [vmem:[#allocation2 + $0x10a] sm:$0x1]
    %v69 = vld [vmem:[#allocation2 + $0x10b] sm:$0x1]
    %v70 = vld [vmem:[%s0] sm:$0xff]
    %v71 = vld [vmem:[%s0 + $0x8] sm:$0xff]
    %vm72 = vcmask 64512
    %v74 = vsel %vm72, %v70, 0
    %v77 = vsel %vm72, %v71, 0
    %79 = vmatprep.subr.mxu0 0.0
    %80 = vmatpush1.msra.mxu0 %v25
    %81 = vmatprep.subr.mxu0 0.0
    %82 = vmatpush1.msra.mxu0 0.0
    %83 = vmatprep.subr.mxu0 0.0
    %84 = vmatpush1.msra.mxu0 0.0
    %85 = vmatprep.subr.mxu0 0.0
    %86 = vmatpush1.msra.mxu0 0.0
    %87 = vmatprep.subr.mxu0 0.0
    %88 = vmatpush1.msra.mxu0 0.0
    %89 = vmatprep.subr.mxu0 0.0
    %90 = vmatpush1.msra.mxu0 0.0
    %91 = vmatprep.subr.mxu0 0.0
    %92 = vmatpush1.msra.mxu0 0.0
    %93 = vmatprep.subr.mxu0 0.0
    %94 = vmatpush1.msra.mxu0 0.0
    %95 = vmatprep.subr.mxu0 0.0
    %96 = vmatpush1.msra.mxu0 0.0
    %97 = vmatprep.subr.mxu0 0.0
    %98 = vmatpush1.msra.mxu0 0.0
    %99 = vmatprep.subr.mxu0 0.0
    %100 = vmatpush1.msra.mxu0 0.0
    %101 = vmatprep.subr.mxu0 0.0
    %102 = vmatpush1.msra.mxu0 0.0
    %103 = vmatprep.subr.mxu0 0.0
    %104 = vmatpush1.msra.mxu0 0.0
    %105 = vmatprep.subr.mxu0 0.0
    %106 = vmatpush1.msra.mxu0 0.0
    %107 = vmatprep.subr.mxu0 0.0
    %108 = vmatpush1.msra.mxu0 0.0
    %109 = vmatprep.subr.mxu0 0.0
    %110 = vmatpush1.msra.mxu0 0.0
    %111 = vmatprep.subr.mxu0 0.0
    %112 = vmatpush1.msra.mxu0 0.0
    %113 = vmatprep.subr.mxu0 0.0
    %114 = vmatpush1.msra.mxu0 0.0
    %115 = vmatprep.subr.mxu0 0.0
    %116 = vmatpush1.msra.mxu0 0.0
    %117 = vmatprep.subr.mxu0 0.0
    %118 = vmatpush1.msra.mxu0 0.0
    %119 = vmatprep.subr.mxu0 0.0
    %120 = vmatpush1.msra.mxu0 0.0
    %121 = vmatprep.subr.mxu0 0.0
    %122 = vmatpush1.msra.mxu0 0.0
    %123 = vmatprep.subr.mxu0 0.0
    %124 = vmatpush1.msra.mxu0 0.0
    %125 = vmatprep.subr.mxu0 0.0
    %126 = vmatpush1.msra.mxu0 0.0
    %127 = vmatprep.subr.mxu0 0.0
    %128 = vmatpush1.msra.mxu0 0.0
    %129 = vmatprep.subr.mxu0 0.0
    %130 = vmatpush1.msra.mxu0 0.0
    %131 = vmatprep.subr.mxu0 0.0
    %132 = vmatpush1.msra.mxu0 0.0
    %133 = vmatprep.subr.mxu0 0.0
    %134 = vmatpush1.msra.mxu0 0.0
    %135 = vmatprep.subr.mxu0 0.0
    %136 = vmatpush1.msra.mxu0 0.0
    %137 = vmatprep.subr.mxu0 0.0
    %138 = vmatpush1.msra.mxu0 0.0
    %139 = vmatprep.subr.mxu0 0.0
    %140 = vmatpush1.msra.mxu0 0.0
    %141 = vmatprep.subr.mxu0 0.0
    %142 = vmatpush1.msra.mxu0 0.0
    %143 = vmatprep.mubr.f32.mxu0 0.0
    %144 = vmatmul.mubr.f32.gmra.mrb[0].mxu0 %v74
    %v145 = vpop.f32.mrb[0].mxu0
    %v146 = vadd.f32 0.0, %v145
    %v147 = vpop.f32.mrb[0].mxu0
    %148 = vmatprep.mubr.f32.mxu0 0.0
    %149 = vmatmul.mubr.f32.gmra.mrb[0].mxu0 %v77
    %v150 = vpop.f32.mrb[0].mxu0
    %v151 = vadd.f32 0.0, %v150
    %v152 = vpop.f32.mrb[0].mxu0
    %153 = vdwg.mxu0
    %vm154 = vcmask 261120
    %v156 = vsel %vm154, 0.0, 0
    %158 = vmatprep.subr.mxu0 0.0
    %159 = vmatpush1.msra.mxu0 %v26
    %160 = vmatprep.subr.mxu0 0.0
    %161 = vmatpush1.msra.mxu0 %v27
    %162 = vmatprep.subr.mxu0 0.0
    %163 = vmatpush1.msra.mxu0 %v28
    %164 = vmatprep.subr.mxu0 0.0
    %165 = vmatpush1.msra.mxu0 %v29
    %166 = vmatprep.subr.mxu0 0.0
    %167 = vmatpush1.msra.mxu0 0.0
    %168 = vmatprep.subr.mxu0 0.0
    %169 = vmatpush1.msra.mxu0 0.0
    %170 = vmatprep.subr.mxu0 0.0
    %171 = vmatpush1.msra.mxu0 0.0
    %172 = vmatprep.subr.mxu0 0.0
    %173 = vmatpush1.msra.mxu0 0.0
    %174 = vmatprep.subr.mxu0 0.0
    %175 = vmatpush1.msra.mxu0 0.0
    %176 = vmatprep.subr.mxu0 0.0
    %177 = vmatpush1.msra.mxu0 0.0
    %178 = vmatprep.subr.mxu0 0.0
    %179 = vmatpush1.msra.mxu0 0.0
    %180 = vmatprep.subr.mxu0 0.0
    %181 = vmatpush1.msra.mxu0 0.0
    %182 = vmatprep.subr.mxu0 0.0
    %183 = vmatpush1.msra.mxu0 0.0
    %184 = vmatprep.subr.mxu0 0.0
    %185 = vmatpush1.msra.mxu0 0.0
    %186 = vmatprep.subr.mxu0 0.0
    %187 = vmatpush1.msra.mxu0 0.0
    %188 = vmatprep.subr.mxu0 0.0
    %189 = vmatpush1.msra.mxu0 0.0
    %190 = vmatprep.subr.mxu0 0.0
    %191 = vmatpush1.msra.mxu0 0.0
    %192 = vmatprep.subr.mxu0 0.0
    %193 = vmatpush1.msra.mxu0 0.0
    %194 = vmatprep.subr.mxu0 0.0
    %195 = vmatpush1.msra.mxu0 0.0
    %196 = vmatprep.subr.mxu0 0.0
    %197 = vmatpush1.msra.mxu0 0.0
    %198 = vmatprep.subr.mxu0 0.0
    %199 = vmatpush1.msra.mxu0 0.0
    %200 = vmatprep.subr.mxu0 0.0
    %201 = vmatpush1.msra.mxu0 0.0
    %202 = vmatprep.subr.mxu0 0.0
    %203 = vmatpush1.msra.mxu0 0.0
    %204 = vmatprep.subr.mxu0 0.0
    %205 = vmatpush1.msra.mxu0 0.0
    %206 = vmatprep.subr.mxu0 0.0
    %207 = vmatpush1.msra.mxu0 0.0
    %208 = vmatprep.subr.mxu0 0.0
    %209 = vmatpush1.msra.mxu0 0.0
    %210 = vmatprep.subr.mxu0 0.0
    %211 = vmatpush1.msra.mxu0 0.0
    %212 = vmatprep.subr.mxu0 0.0
    %213 = vmatpush1.msra.mxu0 0.0
    %214 = vmatprep.subr.mxu0 0.0
    %215 = vmatpush1.msra.mxu0 0.0
    %216 = vmatprep.subr.mxu0 0.0
    %217 = vmatpush1.msra.mxu0 0.0
    %218 = vmatprep.subr.mxu0 0.0
    %219 = vmatpush1.msra.mxu0 0.0
    %220 = vmatprep.subr.mxu0 0.0
    %221 = vmatpush1.msra.mxu0 0.0
    %222 = vmatprep.mubr.f32.mxu0 0.0
    %223 = vmatmul.mubr.f32.gmra.mrb[0].mxu0 %v156
    %v224 = vpop.f32.mrb[0].mxu0
    %v225 = vadd.f32 0.0, %v224
    %v226 = vpop.f32.mrb[0].mxu0
    %227 = vdwg.mxu0
    %v228 = vadd.f32 %v146, %v225
    %v229 = vxor.u32 %v228, 2147483648
    %v230 = vmul.f32 %v229, 1.442695
    %v231 = vpow.pop %v230
    %v232 = vadd.f32 %v231, 1.0
    %v233 = vrcp.pop %v232
    %v234 = vmul.f32 1.0, %v233
    %236 = vrot.lane.b32.xlu0 %v62, 64
    %v237 = vpop.permute.xlu0 %236
    %v239 = vadd.f32 %v225, %v237
    %241 = vrot.lane.b32.xlu0 %v239, 64
    %v242 = vpop.permute.xlu0 %241
    %v244 = vmul.f32 %v234, %v242
    %246 = vrot.lane.b32.xlu0 %v244, 64
    %v247 = vpop.permute.xlu0 %246
    %v249 = vadd.f32 %v146, %v247
    %v250 = vtanh.pop %v249
    %v251 = vsub.f32 0.0, %v250
    %253 = vrot.lane.b32.xlu0 %v251, 96
    %v254 = vpop.permute.xlu0 %253
    %v256 = vmul.f32 %v234, %v254
    %258 = vrot.lane.b32.xlu0 %v256, 32
    %v259 = vpop.permute.xlu0 %258
    %v261 = vadd.f32 %v250, %v259
    %263 = vrot.lane.b32.xlu0 %v261, 64
    %v264 = vpop.permute.xlu0 %263
    %v266 = vsel %vm154, %v264, 0.0
    %vm267 = vcmask 523264
    %v269 = vsel %vm267, %v266, 0
    %271 = vmatprep.subr.mxu0 0.0
    %272 = vmatpush1.msra.mxu0 %v30
    %273 = vmatprep.subr.mxu0 0.0
    %274 = vmatpush1.msra.mxu0 %v31
    %275 = vmatprep.subr.mxu0 0.0
    %276 = vmatpush1.msra.mxu0 %v32
    %277 = vmatprep.subr.mxu0 0.0
    %278 = vmatpush1.msra.mxu0 %v33
    %279 = vmatprep.subr.mxu0 0.0
    %280 = vmatpush1.msra.mxu0 %v34
    %281 = vmatprep.subr.mxu0 0.0
    %282 = vmatpush1.msra.mxu0 %v35
    %283 = vmatprep.subr.mxu0 0.0
    %284 = vmatpush1.msra.mxu0 %v36
    %285 = vmatprep.subr.mxu0 0.0
    %286 = vmatpush1.msra.mxu0 %v37
    %287 = vmatprep.subr.mxu0 0.0
    %288 = vmatpush1.msra.mxu0 0.0
    %289 = vmatprep.subr.mxu0 0.0
    %290 = vmatpush1.msra.mxu0 0.0
    %291 = vmatprep.subr.mxu0 0.0
    %292 = vmatpush1.msra.mxu0 0.0
    %293 = vmatprep.subr.mxu0 0.0
    %294 = vmatpush1.msra.mxu0 0.0
    %295 = vmatprep.subr.mxu0 0.0
    %296 = vmatpush1.msra.mxu0 0.0
    %297 = vmatprep.subr.mxu0 0.0
    %298 = vmatpush1.msra.mxu0 0.0
    %299 = vmatprep.subr.mxu0 0.0
    %300 = vmatpush1.msra.mxu0 0.0
    %301 = vmatprep.subr.mxu0 0.0
    %302 = vmatpush1.msra.mxu0 0.0
    %303 = vmatprep.subr.mxu0 0.0
    %304 = vmatpush1.msra.mxu0 0.0
    %305 = vmatprep.subr.mxu0 0.0
    %306 = vmatpush1.msra.mxu0 0.0
    %307 = vmatprep.subr.mxu0 0.0
    %308 = vmatpush1.msra.mxu0 0.0
    %309 = vmatprep.subr.mxu0 0.0
    %310 = vmatpush1.msra.mxu0 0.0
    %311 = vmatprep.subr.mxu0 0.0
    %312 = vmatpush1.msra.mxu0 0.0
    %313 = vmatprep.subr.mxu0 0.0
    %314 = vmatpush1.msra.mxu0 0.0
    %315 = vmatprep.subr.mxu0 0.0
    %316 = vmatpush1.msra.mxu0 0.0
    %317 = vmatprep.subr.mxu0 0.0
    %318 = vmatpush1.msra.mxu0 0.0
    %319 = vmatprep.subr.mxu0 0.0
    %320 = vmatpush1.msra.mxu0 0.0
    %321 = vmatprep.subr.mxu0 0.0
    %322 = vmatpush1.msra.mxu0 0.0
    %323 = vmatprep.subr.mxu0 0.0
    %324 = vmatpush1.msra.mxu0 0.0
    %325 = vmatprep.subr.mxu0 0.0
    %326 = vmatpush1.msra.mxu0 0.0
    %327 = vmatprep.subr.mxu0 0.0
    %328 = vmatpush1.msra.mxu0 0.0
    %329 = vmatprep.subr.mxu0 0.0
    %330 = vmatpush1.msra.mxu0 0.0
    %331 = vmatprep.subr.mxu0 0.0
    %332 = vmatpush1.msra.mxu0 0.0
    %333 = vmatprep.subr.mxu0 0.0
    %334 = vmatpush1.msra.mxu0 0.0
    %335 = vmatprep.mubr.f32.mxu0 0.0
    %336 = vmatmul.mubr.f32.gmra.mrb[0].mxu0 %v269
    %v337 = vpop.f32.mrb[0].mxu0
    %v338 = vadd.f32 %v67, %v337
    %v339 = vpop.f32.mrb[0].mxu0
    %340 = vdwg.mxu0
    %v341 = vxor.u32 %v338, 2147483648
    %v342 = vmul.f32 %v341, 1.442695
    %v343 = vpow.pop %v342
    %v344 = vadd.f32 %v343, 1.0
    %v345 = vrcp.pop %v344
    %v346 = vmul.f32 1.0, %v345
    %348 = vrot.lane.b32.xlu0 %v338, 32
    %v349 = vpop.permute.xlu0 %348
    %v351 = vmul.f32 %v346, %v349
    %353 = vrot.lane.b32.xlu0 %v351, 64
    %v354 = vpop.permute.xlu0 %353
    %v356 = vadd.f32 %v338, %v354
    %v357 = vtanh.pop %v356
    %v358 = vsub.f32 0.0, %v357
    %360 = vrot.lane.b32.xlu0 %v358, 96
    %v361 = vpop.permute.xlu0 %360
    %v363 = vmul.f32 %v346, %v361
    %365 = vrot.lane.b32.xlu0 %v363, 32
    %v366 = vpop.permute.xlu0 %365
    %v368 = vadd.f32 %v357, %v366
    %v369 = vsel %vm154, %v264, 0
    %371 = vmatprep.subr.mxu0 0.0
    %372 = vmatpush1.msra.mxu0 %v26
    %373 = vmatprep.subr.mxu0 0.0
    %374 = vmatpush1.msra.mxu0 %v27
    %375 = vmatprep.subr.mxu0 0.0
    %376 = vmatpush1.msra.mxu0 %v28
    %377 = vmatprep.subr.mxu0 0.0
    %378 = vmatpush1.msra.mxu0 %v29
    %379 = vmatprep.subr.mxu0 0.0
    %380 = vmatpush1.msra.mxu0 0.0
    %381 = vmatprep.subr.mxu0 0.0
    %382 = vmatpush1.msra.mxu0 0.0
    %383 = vmatprep.subr.mxu0 0.0
    %384 = vmatpush1.msra.mxu0 0.0
    %385 = vmatprep.subr.mxu0 0.0
    %386 = vmatpush1.msra.mxu0 0.0
    %387 = vmatprep.subr.mxu0 0.0
    %388 = vmatpush1.msra.mxu0 0.0
    %389 = vmatprep.subr.mxu0 0.0
    %390 = vmatpush1.msra.mxu0 0.0
    %391 = vmatprep.subr.mxu0 0.0
    %392 = vmatpush1.msra.mxu0 0.0
    %393 = vmatprep.subr.mxu0 0.0
    %394 = vmatpush1.msra.mxu0 0.0
    %395 = vmatprep.subr.mxu0 0.0
    %396 = vmatpush1.msra.mxu0 0.0
    %397 = vmatprep.subr.mxu0 0.0
    %398 = vmatpush1.msra.mxu0 0.0
    %399 = vmatprep.subr.mxu0 0.0
    %400 = vmatpush1.msra.mxu0 0.0
    %401 = vmatprep.subr.mxu0 0.0
    %402 = vmatpush1.msra.mxu0 0.0
    %403 = vmatprep.subr.mxu0 0.0
    %404 = vmatpush1.msra.mxu0 0.0
    %405 = vmatprep.subr.mxu0 0.0
    %406 = vmatpush1.msra.mxu0 0.0
    %407 = vmatprep.subr.mxu0 0.0
    %408 = vmatpush1.msra.mxu0 0.0
    %409 = vmatprep.subr.mxu0 0.0
    %410 = vmatpush1.msra.mxu0 0.0
    %411 = vmatprep.subr.mxu0 0.0
    %412 = vmatpush1.msra.mxu0 0.0
    %413 = vmatprep.subr.mxu0 0.0
    %414 = vmatpush1.msra.mxu0 0.0
    %415 = vmatprep.subr.mxu0 0.0
    %416 = vmatpush1.msra.mxu0 0.0
    %417 = vmatprep.subr.mxu0 0.0
    %418 = vmatpush1.msra.mxu0 0.0
    %419 = vmatprep.subr.mxu0 0.0
    %420 = vmatpush1.msra.mxu0 0.0
    %421 = vmatprep.subr.mxu0 0.0
    %422 = vmatpush1.msra.mxu0 0.0
    %423 = vmatprep.subr.mxu0 0.0
    %424 = vmatpush1.msra.mxu0 0.0
    %425 = vmatprep.subr.mxu0 0.0
    %426 = vmatpush1.msra.mxu0 0.0
    %427 = vmatprep.subr.mxu0 0.0
    %428 = vmatpush1.msra.mxu0 0.0
    %429 = vmatprep.subr.mxu0 0.0
    %430 = vmatpush1.msra.mxu0 0.0
    %431 = vmatprep.subr.mxu0 0.0
    %432 = vmatpush1.msra.mxu0 0.0
    %433 = vmatprep.subr.mxu0 0.0
    %434 = vmatpush1.msra.mxu0 0.0
    %435 = vmatprep.mubr.f32.mxu0 0.0
    %436 = vmatmul.mubr.f32.gmra.mrb[0].mxu0 %v369
    %v437 = vpop.f32.mrb[0].mxu0
    %v438 = vadd.f32 0.0, %v437
    %v439 = vpop.f32.mrb[0].mxu0
    %440 = vdwg.mxu0
    %v442 = vrot.slane %v438, 6
    %v444 = vadd.f32 %v146, %v442
    %v445 = vxor.u32 %v444, 2147483648
    %v446 = vmul.f32 %v445, 1.442695
    %v447 = vpow.pop %v446
    %v448 = vadd.f32 %v447, 1.0
    %v449 = vrcp.pop %v448
    %v450 = vmul.f32 1.0, %v449
    %v451 = vadd.f32 %v438, %v237
    %v453 = vrot.slane %v451, 6
    %454 = vrot.lane.b32.xlu0 %v453, 64
    %v455 = vpop.permute.xlu0 %454
    %v457 = vmul.f32 %v450, %v455
    %459 = vrot.lane.b32.xlu0 %v457, 64
    %v460 = vpop.permute.xlu0 %459
    %v462 = vadd.f32 %v146, %v460
    %v463 = vtanh.pop %v462
    %v465 = vrot.slane %v463, 2
    %v467 = vsub.f32 %v261, %v465
    %v469 = vrot.slane %v467, 6
    %470 = vrot.lane.b32.xlu0 %v469, 96
    %v471 = vpop.permute.xlu0 %470
    %v473 = vmul.f32 %v450, %v471
    %475 = vrot.lane.b32.xlu0 %v473, 32
    %v476 = vpop.permute.xlu0 %475
    %v478 = vadd.f32 %v463, %v476
    %480 = vrot.lane.b32.xlu0 %v478, 64
    %v481 = vpop.permute.xlu0 %480
    %v484 = vrot.slane %v368, 6
    %485 = vrot.lane.b32.xlu0 %v484, 96
    %v486 = vpop.permute.xlu0 %485
    %v488 = vsel %vm154, %v481, %v486
    %v490 = vrot.slane %v488, 2
    %v491 = vsel %vm267, %v490, 0
    %493 = vmatprep.subr.mxu0 0.0
    %494 = vmatpush1.msra.mxu0 %v30
    %495 = vmatprep.subr.mxu0 0.0
    %496 = vmatpush1.msra.mxu0 %v31
    %497 = vmatprep.subr.mxu0 0.0
    %498 = vmatpush1.msra.mxu0 %v32
    %499 = vmatprep.subr.mxu0 0.0
    %500 = vmatpush1.msra.mxu0 %v33
    %501 = vmatprep.subr.mxu0 0.0
    %502 = vmatpush1.msra.mxu0 %v34
    %503 = vmatprep.subr.mxu0 0.0
    %504 = vmatpush1.msra.mxu0 %v35
    %505 = vmatprep.subr.mxu0 0.0
    %506 = vmatpush1.msra.mxu0 %v36
    %507 = vmatprep.subr.mxu0 0.0
    %508 = vmatpush1.msra.mxu0 %v37
    %509 = vmatprep.subr.mxu0 0.0
    %510 = vmatpush1.msra.mxu0 0.0
    %511 = vmatprep.subr.mxu0 0.0
    %512 = vmatpush1.msra.mxu0 0.0
    %513 = vmatprep.subr.mxu0 0.0
    %514 = vmatpush1.msra.mxu0 0.0
    %515 = vmatprep.subr.mxu0 0.0
    %516 = vmatpush1.msra.mxu0 0.0
    %517 = vmatprep.subr.mxu0 0.0
    %518 = vmatpush1.msra.mxu0 0.0
    %519 = vmatprep.subr.mxu0 0.0
    %520 = vmatpush1.msra.mxu0 0.0
    %521 = vmatprep.subr.mxu0 0.0
    %522 = vmatpush1.msra.mxu0 0.0
    %523 = vmatprep.subr.mxu0 0.0
    %524 = vmatpush1.msra.mxu0 0.0
    %525 = vmatprep.subr.mxu0 0.0
    %526 = vmatpush1.msra.mxu0 0.0
    %527 = vmatprep.subr.mxu0 0.0
    %528 = vmatpush1.msra.mxu0 0.0
    %529 = vmatprep.subr.mxu0 0.0
    %530 = vmatpush1.msra.mxu0 0.0
    %531 = vmatprep.subr.mxu0 0.0
    %532 = vmatpush1.msra.mxu0 0.0
    %533 = vmatprep.subr.mxu0 0.0
    %534 = vmatpush1.msra.mxu0 0.0
    %535 = vmatprep.subr.mxu0 0.0
    %536 = vmatpush1.msra.mxu0 0.0
    %537 = vmatprep.subr.mxu0 0.0
    %538 = vmatpush1.msra.mxu0 0.0
    %539 = vmatprep.subr.mxu0 0.0
    %540 = vmatpush1.msra.mxu0 0.0
    %541 = vmatprep.subr.mxu0 0.0
    %542 = vmatpush1.msra.mxu0 0.0
    %543 = vmatprep.subr.mxu0 0.0
    %544 = vmatpush1.msra.mxu0 0.0
    %545 = vmatprep.subr.mxu0 0.0
    %546 = vmatpush1.msra.mxu0 0.0
    %547 = vmatprep.subr.mxu0 0.0
    %548 = vmatpush1.msra.mxu0 0.0
    %549 = vmatprep.subr.mxu0 0.0
    %550 = vmatpush1.msra.mxu0 0.0
    %551 = vmatprep.subr.mxu0 0.0
    %552 = vmatpush1.msra.mxu0 0.0
    %553 = vmatprep.subr.mxu0 0.0
    %554 = vmatpush1.msra.mxu0 0.0
    %555 = vmatprep.subr.mxu0 0.0
    %556 = vmatpush1.msra.mxu0 0.0
    %557 = vmatprep.mubr.f32.mxu0 0.0
    %558 = vmatmul.mubr.f32.gmra.mrb[0].mxu0 %v491
    %v559 = vpop.f32.mrb[0].mxu0
    %v560 = vadd.f32 %v67, %v559
    %v561 = vpop.f32.mrb[0].mxu0
    %562 = vdwg.mxu0
    %v563 = vxor.u32 %v560, 2147483648
    %v564 = vmul.f32 %v563, 1.442695
    %v565 = vpow.pop %v564
    %v566 = vadd.f32 %v565, 1.0
    %v567 = vrcp.pop %v566
    %v568 = vmul.f32 1.0, %v567
    %570 = vrot.lane.b32.xlu0 %v560, 32
    %v571 = vpop.permute.xlu0 %570
    %v573 = vmul.f32 %v568, %v571
    %575 = vrot.lane.b32.xlu0 %v573, 64
    %v576 = vpop.permute.xlu0 %575
    %v578 = vadd.f32 %v560, %v576
    %v579 = vtanh.pop %v578
    %v580 = vsub.f32 %v368, %v579
    %582 = vrot.lane.b32.xlu0 %v580, 96
    %v583 = vpop.permute.xlu0 %582
    %v585 = vmul.f32 %v568, %v583
    %587 = vrot.lane.b32.xlu0 %v585, 32
    %v588 = vpop.permute.xlu0 %587
    %v590 = vadd.f32 %v579, %v588
    %v591 = vrot.slane %v478, 2
    %592 = vrot.lane.b32.xlu0 %v591, 64
    %v593 = vpop.permute.xlu0 %592
    %v594 = vsel %vm154, %v593, 0
    %596 = vmatprep.subr.mxu0 0.0
    %597 = vmatpush1.msra.mxu0 %v26
    %598 = vmatprep.subr.mxu0 0.0
    %599 = vmatpush1.msra.mxu0 %v27
    %600 = vmatprep.subr.mxu0 0.0
    %601 = vmatpush1.msra.mxu0 %v28
    %602 = vmatprep.subr.mxu0 0.0
    %603 = vmatpush1.msra.mxu0 %v29
    %604 = vmatprep.subr.mxu0 0.0
    %605 = vmatpush1.msra.mxu0 0.0
    %606 = vmatprep.subr.mxu0 0.0
    %607 = vmatpush1.msra.mxu0 0.0
    %608 = vmatprep.subr.mxu0 0.0
    %609 = vmatpush1.msra.mxu0 0.0
    %610 = vmatprep.subr.mxu0 0.0
    %611 = vmatpush1.msra.mxu0 0.0
    %612 = vmatprep.subr.mxu0 0.0
    %613 = vmatpush1.msra.mxu0 0.0
    %614 = vmatprep.subr.mxu0 0.0
    %615 = vmatpush1.msra.mxu0 0.0
    %616 = vmatprep.subr.mxu0 0.0
    %617 = vmatpush1.msra.mxu0 0.0
    %618 = vmatprep.subr.mxu0 0.0
    %619 = vmatpush1.msra.mxu0 0.0
    %620 = vmatprep.subr.mxu0 0.0
    %621 = vmatpush1.msra.mxu0 0.0
    %622 = vmatprep.subr.mxu0 0.0
    %623 = vmatpush1.msra.mxu0 0.0
    %624 = vmatprep.subr.mxu0 0.0
    %625 = vmatpush1.msra.mxu0 0.0
    %626 = vmatprep.subr.mxu0 0.0
    %627 = vmatpush1.msra.mxu0 0.0
    %628 = vmatprep.subr.mxu0 0.0
    %629 = vmatpush1.msra.mxu0 0.0
    %630 = vmatprep.subr.mxu0 0.0
    %631 = vmatpush1.msra.mxu0 0.0
    %632 = vmatprep.subr.mxu0 0.0
    %633 = vmatpush1.msra.mxu0 0.0
    %634 = vmatprep.subr.mxu0 0.0
    %635 = vmatpush1.msra.mxu0 0.0
    %636 = vmatprep.subr.mxu0 0.0
    %637 = vmatpush1.msra.mxu0 0.0
    %638 = vmatprep.subr.mxu0 0.0
    %639 = vmatpush1.msra.mxu0 0.0
    %640 = vmatprep.subr.mxu0 0.0
    %641 = vmatpush1.msra.mxu0 0.0
    %642 = vmatprep.subr.mxu0 0.0
    %643 = vmatpush1.msra.mxu0 0.0
    %644 = vmatprep.subr.mxu0 0.0
    %645 = vmatpush1.msra.mxu0 0.0
    %646 = vmatprep.subr.mxu0 0.0
    %647 = vmatpush1.msra.mxu0 0.0
    %648 = vmatprep.subr.mxu0 0.0
    %649 = vmatpush1.msra.mxu0 0.0
    %650 = vmatprep.subr.mxu0 0.0
    %651 = vmatpush1.msra.mxu0 0.0
    %652 = vmatprep.subr.mxu0 0.0
    %653 = vmatpush1.msra.mxu0 0.0
    %654 = vmatprep.subr.mxu0 0.0
    %655 = vmatpush1.msra.mxu0 0.0
    %656 = vmatprep.subr.mxu0 0.0
    %657 = vmatpush1.msra.mxu0 0.0
    %658 = vmatprep.subr.mxu0 0.0
    %659 = vmatpush1.msra.mxu0 0.0
    %660 = vmatprep.mubr.f32.mxu0 0.0
    %661 = vmatmul.mubr.f32.gmra.mrb[0].mxu0 %v594
    %v662 = vpop.f32.mrb[0].mxu0
    %v663 = vadd.f32 0.0, %v662
    %v664 = vpop.f32.mrb[0].mxu0
    %665 = vdwg.mxu0
    %v667 = vrot.slane %v663, 4
    %v669 = vadd.f32 %v146, %v667
    %v670 = vxor.u32 %v669, 2147483648
    %v671 = vmul.f32 %v670, 1.442695
    %v672 = vpow.pop %v671
    %v673 = vadd.f32 %v672, 1.0
    %v674 = vrcp.pop %v673
    %v675 = vmul.f32 1.0, %v674
    %v676 = vadd.f32 %v663, %v237
    %v678 = vrot.slane %v676, 4
    %679 = vrot.lane.b32.xlu0 %v678, 64
    %v680 = vpop.permute.xlu0 %679
    %v682 = vmul.f32 %v675, %v680
    %684 = vrot.lane.b32.xlu0 %v682, 64
    %v685 = vpop.permute.xlu0 %684
    %v687 = vadd.f32 %v146, %v685
    %v688 = vtanh.pop %v687
    %v690 = vrot.slane %v688, 2
    %v692 = vsub.f32 %v478, %v690
    %v694 = vrot.slane %v692, 6
    %695 = vrot.lane.b32.xlu0 %v694, 96
    %v696 = vpop.permute.xlu0 %695
    %v698 = vmul.f32 %v675, %v696
    %700 = vrot.lane.b32.xlu0 %v698, 32
    %v701 = vpop.permute.xlu0 %700
    %v703 = vadd.f32 %v688, %v701
    %705 = vrot.lane.b32.xlu0 %v703, 64
    %v706 = vpop.permute.xlu0 %705
    %v709 = vrot.slane %v590, 4
    %710 = vrot.lane.b32.xlu0 %v709, 96
    %v711 = vpop.permute.xlu0 %710
    %v713 = vsel %vm154, %v706, %v711
    %v715 = vrot.slane %v713, 4
    %v716 = vsel %vm267, %v715, 0
    %718 = vmatprep.subr.mxu0 0.0
    %719 = vmatpush1.msra.mxu0 %v30
    %720 = vmatprep.subr.mxu0 0.0
    %721 = vmatpush1.msra.mxu0 %v31
    %722 = vmatprep.subr.mxu0 0.0
    %723 = vmatpush1.msra.mxu0 %v32
    %724 = vmatprep.subr.mxu0 0.0
    %725 = vmatpush1.msra.mxu0 %v33
    %726 = vmatprep.subr.mxu0 0.0
    %727 = vmatpush1.msra.mxu0 %v34
    %728 = vmatprep.subr.mxu0 0.0
    %729 = vmatpush1.msra.mxu0 %v35
    %730 = vmatprep.subr.mxu0 0.0
    %731 = vmatpush1.msra.mxu0 %v36
    %732 = vmatprep.subr.mxu0 0.0
    %733 = vmatpush1.msra.mxu0 %v37
    %734 = vmatprep.subr.mxu0 0.0
    %735 = vmatpush1.msra.mxu0 0.0
    %736 = vmatprep.subr.mxu0 0.0
    %737 = vmatpush1.msra.mxu0 0.0
    %738 = vmatprep.subr.mxu0 0.0
    %739 = vmatpush1.msra.mxu0 0.0
    %740 = vmatprep.subr.mxu0 0.0
    %741 = vmatpush1.msra.mxu0 0.0
    %742 = vmatprep.subr.mxu0 0.0
    %743 = vmatpush1.msra.mxu0 0.0
    %744 = vmatprep.subr.mxu0 0.0
    %745 = vmatpush1.msra.mxu0 0.0
    %746 = vmatprep.subr.mxu0 0.0
    %747 = vmatpush1.msra.mxu0 0.0
    %748 = vmatprep.subr.mxu0 0.0
    %749 = vmatpush1.msra.mxu0 0.0
    %750 = vmatprep.subr.mxu0 0.0
    %751 = vmatpush1.msra.mxu0 0.0
    %752 = vmatprep.subr.mxu0 0.0
    %753 = vmatpush1.msra.mxu0 0.0
    %754 = vmatprep.subr.mxu0 0.0
    %755 = vmatpush1.msra.mxu0 0.0
    %756 = vmatprep.subr.mxu0 0.0
    %757 = vmatpush1.msra.mxu0 0.0
    %758 = vmatprep.subr.mxu0 0.0
    %759 = vmatpush1.msra.mxu0 0.0
    %760 = vmatprep.subr.mxu0 0.0
    %761 = vmatpush1.msra.mxu0 0.0
    %762 = vmatprep.subr.mxu0 0.0
    %763 = vmatpush1.msra.mxu0 0.0
    %764 = vmatprep.subr.mxu0 0.0
    %765 = vmatpush1.msra.mxu0 0.0
    %766 = vmatprep.subr.mxu0 0.0
    %767 = vmatpush1.msra.mxu0 0.0
    %768 = vmatprep.subr.mxu0 0.0
    %769 = vmatpush1.msra.mxu0 0.0
    %770 = vmatprep.subr.mxu0 0.0
    %771 = vmatpush1.msra.mxu0 0.0
    %772 = vmatprep.subr.mxu0 0.0
    %773 = vmatpush1.msra.mxu0 0.0
    %774 = vmatprep.subr.mxu0 0.0
    %775 = vmatpush1.msra.mxu0 0.0
    %776 = vmatprep.subr.mxu0 0.0
    %777 = vmatpush1.msra.mxu0 0.0
    %778 = vmatprep.subr.mxu0 0.0
    %779 = vmatpush1.msra.mxu0 0.0
    %780 = vmatprep.subr.mxu0 0.0
    %781 = vmatpush1.msra.mxu0 0.0
    %782 = vmatprep.mubr.f32.mxu0 0.0
    %783 = vmatmul.mubr.f32.gmra.mrb[0].mxu0 %v716
    %v784 = vpop.f32.mrb[0].mxu0
    %v785 = vadd.f32 %v67, %v784
    %v786 = vpop.f32.mrb[0].mxu0
    %787 = vdwg.mxu0
    %v788 = vxor.u32 %v785, 2147483648
    %v789 = vmul.f32 %v788, 1.442695
    %v790 = vpow.pop %v789
    %v791 = vadd.f32 %v790, 1.0
    %v792 = vrcp.pop %v791
    %v793 = vmul.f32 1.0, %v792
    %795 = vrot.lane.b32.xlu0 %v785, 32
    %v796 = vpop.permute.xlu0 %795
    %v798 = vmul.f32 %v793, %v796
    %800 = vrot.lane.b32.xlu0 %v798, 64
    %v801 = vpop.permute.xlu0 %800
    %v803 = vadd.f32 %v785, %v801
    %v804 = vtanh.pop %v803
    %v805 = vsub.f32 %v590, %v804
    %807 = vrot.lane.b32.xlu0 %v805, 96
    %v808 = vpop.permute.xlu0 %807
    %v810 = vmul.f32 %v793, %v808
    %812 = vrot.lane.b32.xlu0 %v810, 32
    %v813 = vpop.permute.xlu0 %812
    %v815 = vadd.f32 %v804, %v813
    %v816 = vrot.slane %v703, 4
    %817 = vrot.lane.b32.xlu0 %v816, 64
    %v818 = vpop.permute.xlu0 %817
    %v819 = vsel %vm154, %v818, 0
    %821 = vmatprep.subr.mxu0 0.0
    %822 = vmatpush1.msra.mxu0 %v26
    %823 = vmatprep.subr.mxu0 0.0
    %824 = vmatpush1.msra.mxu0 %v27
    %825 = vmatprep.subr.mxu0 0.0
    %826 = vmatpush1.msra.mxu0 %v28
    %827 = vmatprep.subr.mxu0 0.0
    %828 = vmatpush1.msra.mxu0 %v29
    %829 = vmatprep.subr.mxu0 0.0
    %830 = vmatpush1.msra.mxu0 0.0
    %831 = vmatprep.subr.mxu0 0.0
    %832 = vmatpush1.msra.mxu0 0.0
    %833 = vmatprep.subr.mxu0 0.0
    %834 = vmatpush1.msra.mxu0 0.0
    %835 = vmatprep.subr.mxu0 0.0
    %836 = vmatpush1.msra.mxu0 0.0
    %837 = vmatprep.subr.mxu0 0.0
    %838 = vmatpush1.msra.mxu0 0.0
    %839 = vmatprep.subr.mxu0 0.0
    %840 = vmatpush1.msra.mxu0 0.0
    %841 = vmatprep.subr.mxu0 0.0
    %842 = vmatpush1.msra.mxu0 0.0
    %843 = vmatprep.subr.mxu0 0.0
    %844 = vmatpush1.msra.mxu0 0.0
    %845 = vmatprep.subr.mxu0 0.0
    %846 = vmatpush1.msra.mxu0 0.0
    %847 = vmatprep.subr.mxu0 0.0
    %848 = vmatpush1.msra.mxu0 0.0
    %849 = vmatprep.subr.mxu0 0.0
    %850 = vmatpush1.msra.mxu0 0.0
    %851 = vmatprep.subr.mxu0 0.0
    %852 = vmatpush1.msra.mxu0 0.0
    %853 = vmatprep.subr.mxu0 0.0
    %854 = vmatpush1.msra.mxu0 0.0
    %855 = vmatprep.subr.mxu0 0.0
    %856 = vmatpush1.msra.mxu0 0.0
    %857 = vmatprep.subr.mxu0 0.0
    %858 = vmatpush1.msra.mxu0 0.0
    %859 = vmatprep.subr.mxu0 0.0
    %860 = vmatpush1.msra.mxu0 0.0
    %861 = vmatprep.subr.mxu0 0.0
    %862 = vmatpush1.msra.mxu0 0.0
    %863 = vmatprep.subr.mxu0 0.0
    %864 = vmatpush1.msra.mxu0 0.0
    %865 = vmatprep.subr.mxu0 0.0
    %866 = vmatpush1.msra.mxu0 0.0
    %867 = vmatprep.subr.mxu0 0.0
    %868 = vmatpush1.msra.mxu0 0.0
    %869 = vmatprep.subr.mxu0 0.0
    %870 = vmatpush1.msra.mxu0 0.0
    %871 = vmatprep.subr.mxu0 0.0
    %872 = vmatpush1.msra.mxu0 0.0
    %873 = vmatprep.subr.mxu0 0.0
    %874 = vmatpush1.msra.mxu0 0.0
    %875 = vmatprep.subr.mxu0 0.0
    %876 = vmatpush1.msra.mxu0 0.0
    %877 = vmatprep.subr.mxu0 0.0
    %878 = vmatpush1.msra.mxu0 0.0
    %879 = vmatprep.subr.mxu0 0.0
    %880 = vmatpush1.msra.mxu0 0.0
    %881 = vmatprep.subr.mxu0 0.0
    %882 = vmatpush1.msra.mxu0 0.0
    %883 = vmatprep.subr.mxu0 0.0
    %884 = vmatpush1.msra.mxu0 0.0
    %885 = vmatprep.mubr.f32.mxu0 0.0
    %886 = vmatmul.mubr.f32.gmra.mrb[0].mxu0 %v819
    %v887 = vpop.f32.mrb[0].mxu0
    %v888 = vadd.f32 0.0, %v887
    %v889 = vpop.f32.mrb[0].mxu0
    %890 = vdwg.mxu0
    %v892 = vrot.slane %v888, 2
    %v894 = vadd.f32 %v146, %v892
    %v895 = vxor.u32 %v894, 2147483648
    %v896 = vmul.f32 %v895, 1.442695
    %v897 = vpow.pop %v896
    %v898 = vadd.f32 %v897, 1.0
    %v899 = vrcp.pop %v898
    %v900 = vmul.f32 1.0, %v899
    %v901 = vadd.f32 %v888, %v237
    %v903 = vrot.slane %v901, 2
    %904 = vrot.lane.b32.xlu0 %v903, 64
    %v905 = vpop.permute.xlu0 %904
    %v907 = vmul.f32 %v900, %v905
    %909 = vrot.lane.b32.xlu0 %v907, 64
    %v910 = vpop.permute.xlu0 %909
    %v912 = vadd.f32 %v146, %v910
    %v913 = vtanh.pop %v912
    %v915 = vrot.slane %v913, 2
    %v917 = vsub.f32 %v703, %v915
    %v919 = vrot.slane %v917, 6
    %920 = vrot.lane.b32.xlu0 %v919, 96
    %v921 = vpop.permute.xlu0 %920
    %v923 = vmul.f32 %v900, %v921
    %925 = vrot.lane.b32.xlu0 %v923, 32
    %v926 = vpop.permute.xlu0 %925
    %v928 = vadd.f32 %v913, %v926
    %930 = vrot.lane.b32.xlu0 %v928, 64
    %v931 = vpop.permute.xlu0 %930
    %v934 = vrot.slane %v815, 2
    %935 = vrot.lane.b32.xlu0 %v934, 96
    %v936 = vpop.permute.xlu0 %935
    %v938 = vsel %vm154, %v931, %v936
    %v940 = vrot.slane %v938, 6
    %v941 = vsel %vm267, %v940, 0
    %943 = vmatprep.subr.mxu0 0.0
    %944 = vmatpush1.msra.mxu0 %v30
    %945 = vmatprep.subr.mxu0 0.0
    %946 = vmatpush1.msra.mxu0 %v31
    %947 = vmatprep.subr.mxu0 0.0
    %948 = vmatpush1.msra.mxu0 %v32
    %949 = vmatprep.subr.mxu0 0.0
    %950 = vmatpush1.msra.mxu0 %v33
    %951 = vmatprep.subr.mxu0 0.0
    %952 = vmatpush1.msra.mxu0 %v34
    %953 = vmatprep.subr.mxu0 0.0
    %954 = vmatpush1.msra.mxu0 %v35
    %955 = vmatprep.subr.mxu0 0.0
    %956 = vmatpush1.msra.mxu0 %v36
    %957 = vmatprep.subr.mxu0 0.0
    %958 = vmatpush1.msra.mxu0 %v37
    %959 = vmatprep.subr.mxu0 0.0
    %960 = vmatpush1.msra.mxu0 0.0
    %961 = vmatprep.subr.mxu0 0.0
    %962 = vmatpush1.msra.mxu0 0.0
    %963 = vmatprep.subr.mxu0 0.0
    %964 = vmatpush1.msra.mxu0 0.0
    %965 = vmatprep.subr.mxu0 0.0
    %966 = vmatpush1.msra.mxu0 0.0
    %967 = vmatprep.subr.mxu0 0.0
    %968 = vmatpush1.msra.mxu0 0.0
    %969 = vmatprep.subr.mxu0 0.0
    %970 = vmatpush1.msra.mxu0 0.0
    %971 = vmatprep.subr.mxu0 0.0
    %972 = vmatpush1.msra.mxu0 0.0
    %973 = vmatprep.subr.mxu0 0.0
    %974 = vmatpush1.msra.mxu0 0.0
    %975 = vmatprep.subr.mxu0 0.0
    %976 = vmatpush1.msra.mxu0 0.0
    %977 = vmatprep.subr.mxu0 0.0
    %978 = vmatpush1.msra.mxu0 0.0
    %979 = vmatprep.subr.mxu0 0.0
    %980 = vmatpush1.msra.mxu0 0.0
    %981 = vmatprep.subr.mxu0 0.0
    %982 = vmatpush1.msra.mxu0 0.0
    %983 = vmatprep.subr.mxu0 0.0
    %984 = vmatpush1.msra.mxu0 0.0
    %985 = vmatprep.subr.mxu0 0.0
    %986 = vmatpush1.msra.mxu0 0.0
    %987 = vmatprep.subr.mxu0 0.0
    %988 = vmatpush1.msra.mxu0 0.0
    %989 = vmatprep.subr.mxu0 0.0
    %990 = vmatpush1.msra.mxu0 0.0
    %991 = vmatprep.subr.mxu0 0.0
    %992 = vmatpush1.msra.mxu0 0.0
    %993 = vmatprep.subr.mxu0 0.0
    %994 = vmatpush1.msra.mxu0 0.0
    %995 = vmatprep.subr.mxu0 0.0
    %996 = vmatpush1.msra.mxu0 0.0
    %997 = vmatprep.subr.mxu0 0.0
    %998 = vmatpush1.msra.mxu0 0.0
    %999 = vmatprep.subr.mxu0 0.0
    %1000 = vmatpush1.msra.mxu0 0.0
    %1001 = vmatprep.subr.mxu0 0.0
    %1002 = vmatpush1.msra.mxu0 0.0
    %1003 = vmatprep.subr.mxu0 0.0
    %1004 = vmatpush1.msra.mxu0 0.0
    %1005 = vmatprep.subr.mxu0 0.0
    %1006 = vmatpush1.msra.mxu0 0.0
    %1007 = vmatprep.mubr.f32.mxu0 0.0
    %1008 = vmatmul.mubr.f32.gmra.mrb[0].mxu0 %v941
    %v1009 = vpop.f32.mrb[0].mxu0
    %v1010 = vadd.f32 %v67, %v1009
    %v1011 = vpop.f32.mrb[0].mxu0
    %1012 = vdwg.mxu0
    %v1013 = vxor.u32 %v1010, 2147483648
    %v1014 = vmul.f32 %v1013, 1.442695
    %v1015 = vpow.pop %v1014
    %v1016 = vadd.f32 %v1015, 1.0
    %v1017 = vrcp.pop %v1016
    %v1018 = vmul.f32 1.0, %v1017
    %1020 = vrot.lane.b32.xlu0 %v1010, 32
    %v1021 = vpop.permute.xlu0 %1020
    %v1023 = vmul.f32 %v1018, %v1021
    %1025 = vrot.lane.b32.xlu0 %v1023, 64
    %v1026 = vpop.permute.xlu0 %1025
    %v1028 = vadd.f32 %v1010, %v1026
    %v1029 = vtanh.pop %v1028
    %v1030 = vsub.f32 %v815, %v1029
    %1032 = vrot.lane.b32.xlu0 %v1030, 96
    %v1033 = vpop.permute.xlu0 %1032
    %v1035 = vmul.f32 %v1018, %v1033
    %1037 = vrot.lane.b32.xlu0 %v1035, 32
    %v1038 = vpop.permute.xlu0 %1037
    %v1040 = vadd.f32 %v1029, %v1038
    %v1041 = vrot.slane %v928, 6
    %1042 = vrot.lane.b32.xlu0 %v1041, 64
    %v1043 = vpop.permute.xlu0 %1042
    %v1044 = vsel %vm154, %v1043, 0
    %1046 = vmatprep.subr.mxu0 0.0
    %1047 = vmatpush1.msra.mxu0 %v26
    %1048 = vmatprep.subr.mxu0 0.0
    %1049 = vmatpush1.msra.mxu0 %v27
    %1050 = vmatprep.subr.mxu0 0.0
    %1051 = vmatpush1.msra.mxu0 %v28
    %1052 = vmatprep.subr.mxu0 0.0
    %1053 = vmatpush1.msra.mxu0 %v29
    %1054 = vmatprep.subr.mxu0 0.0
    %1055 = vmatpush1.msra.mxu0 0.0
    %1056 = vmatprep.subr.mxu0 0.0
    %1057 = vmatpush1.msra.mxu0 0.0
    %1058 = vmatprep.subr.mxu0 0.0
    %1059 = vmatpush1.msra.mxu0 0.0
    %1060 = vmatprep.subr.mxu0 0.0
    %1061 = vmatpush1.msra.mxu0 0.0
    %1062 = vmatprep.subr.mxu0 0.0
    %1063 = vmatpush1.msra.mxu0 0.0
    %1064 = vmatprep.subr.mxu0 0.0
    %1065 = vmatpush1.msra.mxu0 0.0
    %1066 = vmatprep.subr.mxu0 0.0
    %1067 = vmatpush1.msra.mxu0 0.0
    %1068 = vmatprep.subr.mxu0 0.0
    %1069 = vmatpush1.msra.mxu0 0.0
    %1070 = vmatprep.subr.mxu0 0.0
    %1071 = vmatpush1.msra.mxu0 0.0
    %1072 = vmatprep.subr.mxu0 0.0
    %1073 = vmatpush1.msra.mxu0 0.0
    %1074 = vmatprep.subr.mxu0 0.0
    %1075 = vmatpush1.msra.mxu0 0.0
    %1076 = vmatprep.subr.mxu0 0.0
    %1077 = vmatpush1.msra.mxu0 0.0
    %1078 = vmatprep.subr.mxu0 0.0
    %1079 = vmatpush1.msra.mxu0 0.0
    %1080 = vmatprep.subr.mxu0 0.0
    %1081 = vmatpush1.msra.mxu0 0.0
    %1082 = vmatprep.subr.mxu0 0.0
    %1083 = vmatpush1.msra.mxu0 0.0
    %1084 = vmatprep.subr.mxu0 0.0
    %1085 = vmatpush1.msra.mxu0 0.0
    %1086 = vmatprep.subr.mxu0 0.0
    %1087 = vmatpush1.msra.mxu0 0.0
    %1088 = vmatprep.subr.mxu0 0.0
    %1089 = vmatpush1.msra.mxu0 0.0
    %1090 = vmatprep.subr.mxu0 0.0
    %1091 = vmatpush1.msra.mxu0 0.0
    %1092 = vmatprep.subr.mxu0 0.0
    %1093 = vmatpush1.msra.mxu0 0.0
    %1094 = vmatprep.subr.mxu0 0.0
    %1095 = vmatpush1.msra.mxu0 0.0
    %1096 = vmatprep.subr.mxu0 0.0
    %1097 = vmatpush1.msra.mxu0 0.0
    %1098 = vmatprep.subr.mxu0 0.0
    %1099 = vmatpush1.msra.mxu0 0.0
    %1100 = vmatprep.subr.mxu0 0.0
    %1101 = vmatpush1.msra.mxu0 0.0
    %1102 = vmatprep.subr.mxu0 0.0
    %1103 = vmatpush1.msra.mxu0 0.0
    %1104 = vmatprep.subr.mxu0 0.0
    %1105 = vmatpush1.msra.mxu0 0.0
    %1106 = vmatprep.subr.mxu0 0.0
    %1107 = vmatpush1.msra.mxu0 0.0
    %1108 = vmatprep.subr.mxu0 0.0
    %1109 = vmatpush1.msra.mxu0 0.0
    %1110 = vmatprep.mubr.f32.mxu0 0.0
    %1111 = vmatmul.mubr.f32.gmra.mrb[0].mxu0 %v1044
    %v1112 = vpop.f32.mrb[0].mxu0
    %v1113 = vadd.f32 0.0, %v1112
    %v1114 = vpop.f32.mrb[0].mxu0
    %1115 = vdwg.mxu0
    %v1116 = vadd.f32 %v151, %v1113
    %v1117 = vxor.u32 %v1116, 2147483648
    %v1118 = vmul.f32 %v1117, 1.442695
    %v1119 = vpow.pop %v1118
    %v1120 = vadd.f32 %v1119, 1.0
    %v1121 = vrcp.pop %v1120
    %v1122 = vmul.f32 1.0, %v1121
    %v1123 = vadd.f32 %v1113, %v237
    %1125 = vrot.lane.b32.xlu0 %v1123, 64
    %v1126 = vpop.permute.xlu0 %1125
    %v1128 = vmul.f32 %v1122, %v1126
    %1130 = vrot.lane.b32.xlu0 %v1128, 64
    %v1131 = vpop.permute.xlu0 %1130
    %v1133 = vadd.f32 %v151, %v1131
    %v1134 = vtanh.pop %v1133
    %v1136 = vrot.slane %v1134, 2
    %v1138 = vsub.f32 %v928, %v1136
    %v1140 = vrot.slane %v1138, 6
    %1141 = vrot.lane.b32.xlu0 %v1140, 96
    %v1142 = vpop.permute.xlu0 %1141
    %v1144 = vmul.f32 %v1122, %v1142
    %1146 = vrot.lane.b32.xlu0 %v1144, 32
    %v1147 = vpop.permute.xlu0 %1146
    %v1149 = vadd.f32 %v1134, %v1147
    %1151 = vrot.lane.b32.xlu0 %v1149, 64
    %v1152 = vpop.permute.xlu0 %1151
    %1155 = vrot.lane.b32.xlu0 %v1040, 96
    %v1156 = vpop.permute.xlu0 %1155
    %v1158 = vsel %vm154, %v1152, %v1156
    %v1160 = vsel %vm267, %v1158, 0
    %1162 = vmatprep.subr.mxu0 0.0
    %1163 = vmatpush1.msra.mxu0 %v30
    %1164 = vmatprep.subr.mxu0 0.0
    %1165 = vmatpush1.msra.mxu0 %v31
    %1166 = vmatprep.subr.mxu0 0.0
    %1167 = vmatpush1.msra.mxu0 %v32
    %1168 = vmatprep.subr.mxu0 0.0
    %1169 = vmatpush1.msra.mxu0 %v33
    %1170 = vmatprep.subr.mxu0 0.0
    %1171 = vmatpush1.msra.mxu0 %v34
    %1172 = vmatprep.subr.mxu0 0.0
    %1173 = vmatpush1.msra.mxu0 %v35
    %1174 = vmatprep.subr.mxu0 0.0
    %1175 = vmatpush1.msra.mxu0 %v36
    %1176 = vmatprep.subr.mxu0 0.0
    %1177 = vmatpush1.msra.mxu0 %v37
    %1178 = vmatprep.subr.mxu0 0.0
    %1179 = vmatpush1.msra.mxu0 0.0
    %1180 = vmatprep.subr.mxu0 0.0
    %1181 = vmatpush1.msra.mxu0 0.0
    %1182 = vmatprep.subr.mxu0 0.0
    %1183 = vmatpush1.msra.mxu0 0.0
    %1184 = vmatprep.subr.mxu0 0.0
    %1185 = vmatpush1.msra.mxu0 0.0
    %1186 = vmatprep.subr.mxu0 0.0
    %1187 = vmatpush1.msra.mxu0 0.0
    %1188 = vmatprep.subr.mxu0 0.0
    %1189 = vmatpush1.msra.mxu0 0.0
    %1190 = vmatprep.subr.mxu0 0.0
    %1191 = vmatpush1.msra.mxu0 0.0
    %1192 = vmatprep.subr.mxu0 0.0
    %1193 = vmatpush1.msra.mxu0 0.0
    %1194 = vmatprep.subr.mxu0 0.0
    %1195 = vmatpush1.msra.mxu0 0.0
    %1196 = vmatprep.subr.mxu0 0.0
    %1197 = vmatpush1.msra.mxu0 0.0
    %1198 = vmatprep.subr.mxu0 0.0
    %1199 = vmatpush1.msra.mxu0 0.0
    %1200 = vmatprep.subr.mxu0 0.0
    %1201 = vmatpush1.msra.mxu0 0.0
    %1202 = vmatprep.subr.mxu0 0.0
    %1203 = vmatpush1.msra.mxu0 0.0
    %1204 = vmatprep.subr.mxu0 0.0
    %1205 = vmatpush1.msra.mxu0 0.0
    %1206 = vmatprep.subr.mxu0 0.0
    %1207 = vmatpush1.msra.mxu0 0.0
    %1208 = vmatprep.subr.mxu0 0.0
    %1209 = vmatpush1.msra.mxu0 0.0
    %1210 = vmatprep.subr.mxu0 0.0
    %1211 = vmatpush1.msra.mxu0 0.0
    %1212 = vmatprep.subr.mxu0 0.0
    %1213 = vmatpush1.msra.mxu0 0.0
    %1214 = vmatprep.subr.mxu0 0.0
    %1215 = vmatpush1.msra.mxu0 0.0
    %1216 = vmatprep.subr.mxu0 0.0
    %1217 = vmatpush1.msra.mxu0 0.0
    %1218 = vmatprep.subr.mxu0 0.0
    %1219 = vmatpush1.msra.mxu0 0.0
    %1220 = vmatprep.subr.mxu0 0.0
    %1221 = vmatpush1.msra.mxu0 0.0
    %1222 = vmatprep.subr.mxu0 0.0
    %1223 = vmatpush1.msra.mxu0 0.0
    %1224 = vmatprep.subr.mxu0 0.0
    %1225 = vmatpush1.msra.mxu0 0.0
    %1226 = vmatprep.mubr.f32.mxu0 0.0
    %1227 = vmatmul.mubr.f32.gmra.mrb[0].mxu0 %v1160
    %v1228 = vpop.f32.mrb[0].mxu0
    %v1229 = vadd.f32 %v67, %v1228
    %v1230 = vpop.f32.mrb[0].mxu0
    %1231 = vdwg.mxu0
    %v1232 = vxor.u32 %v1229, 2147483648
    %v1233 = vmul.f32 %v1232, 1.442695
    %v1234 = vpow.pop %v1233
    %v1235 = vadd.f32 %v1234, 1.0
    %v1236 = vrcp.pop %v1235
    %v1237 = vmul.f32 1.0, %v1236
    %1239 = vrot.lane.b32.xlu0 %v1229, 32
    %v1240 = vpop.permute.xlu0 %1239
    %v1242 = vmul.f32 %v1237, %v1240
    %1244 = vrot.lane.b32.xlu0 %v1242, 64
    %v1245 = vpop.permute.xlu0 %1244
    %v1247 = vadd.f32 %v1229, %v1245
    %v1248 = vtanh.pop %v1247
    %v1249 = vsub.f32 %v1040, %v1248
    %1251 = vrot.lane.b32.xlu0 %v1249, 96
    %v1252 = vpop.permute.xlu0 %1251
    %v1254 = vmul.f32 %v1237, %v1252
    %1256 = vrot.lane.b32.xlu0 %v1254, 32
    %v1257 = vpop.permute.xlu0 %1256
    %v1259 = vadd.f32 %v1248, %v1257
    %v1260 = vsel %vm154, %v1152, 0
    %1262 = vmatprep.subr.mxu0 0.0
    %1263 = vmatpush1.msra.mxu0 %v26
    %1264 = vmatprep.subr.mxu0 0.0
    %1265 = vmatpush1.msra.mxu0 %v27
    %1266 = vmatprep.subr.mxu0 0.0
    %1267 = vmatpush1.msra.mxu0 %v28
    %1268 = vmatprep.subr.mxu0 0.0
    %1269 = vmatpush1.msra.mxu0 %v29
    %1270 = vmatprep.subr.mxu0 0.0
    %1271 = vmatpush1.msra.mxu0 0.0
    %1272 = vmatprep.subr.mxu0 0.0
    %1273 = vmatpush1.msra.mxu0 0.0
    %1274 = vmatprep.subr.mxu0 0.0
    %1275 = vmatpush1.msra.mxu0 0.0
    %1276 = vmatprep.subr.mxu0 0.0
    %1277 = vmatpush1.msra.mxu0 0.0
    %1278 = vmatprep.subr.mxu0 0.0
    %1279 = vmatpush1.msra.mxu0 0.0
    %1280 = vmatprep.subr.mxu0 0.0
    %1281 = vmatpush1.msra.mxu0 0.0
    %1282 = vmatprep.subr.mxu0 0.0
    %1283 = vmatpush1.msra.mxu0 0.0
    %1284 = vmatprep.subr.mxu0 0.0
    %1285 = vmatpush1.msra.mxu0 0.0
    %1286 = vmatprep.subr.mxu0 0.0
    %1287 = vmatpush1.msra.mxu0 0.0
    %1288 = vmatprep.subr.mxu0 0.0
    %1289 = vmatpush1.msra.mxu0 0.0
    %1290 = vmatprep.subr.mxu0 0.0
    %1291 = vmatpush1.msra.mxu0 0.0
    %1292 = vmatprep.subr.mxu0 0.0
    %1293 = vmatpush1.msra.mxu0 0.0
    %1294 = vmatprep.subr.mxu0 0.0
    %1295 = vmatpush1.msra.mxu0 0.0
    %1296 = vmatprep.subr.mxu0 0.0
    %1297 = vmatpush1.msra.mxu0 0.0
    %1298 = vmatprep.subr.mxu0 0.0
    %1299 = vmatpush1.msra.mxu0 0.0
    %1300 = vmatprep.subr.mxu0 0.0
    %1301 = vmatpush1.msra.mxu0 0.0
    %1302 = vmatprep.subr.mxu0 0.0
    %1303 = vmatpush1.msra.mxu0 0.0
    %1304 = vmatprep.subr.mxu0 0.0
    %1305 = vmatpush1.msra.mxu0 0.0
    %1306 = vmatprep.subr.mxu0 0.0
    %1307 = vmatpush1.msra.mxu0 0.0
    %1308 = vmatprep.subr.mxu0 0.0
    %1309 = vmatpush1.msra.mxu0 0.0
    %1310 = vmatprep.subr.mxu0 0.0
    %1311 = vmatpush1.msra.mxu0 0.0
    %1312 = vmatprep.subr.mxu0 0.0
    %1313 = vmatpush1.msra.mxu0 0.0
    %1314 = vmatprep.subr.mxu0 0.0
    %1315 = vmatpush1.msra.mxu0 0.0
    %1316 = vmatprep.subr.mxu0 0.0
    %1317 = vmatpush1.msra.mxu0 0.0
    %1318 = vmatprep.subr.mxu0 0.0
    %1319 = vmatpush1.msra.mxu0 0.0
    %1320 = vmatprep.subr.mxu0 0.0
    %1321 = vmatpush1.msra.mxu0 0.0
    %1322 = vmatprep.subr.mxu0 0.0
    %1323 = vmatpush1.msra.mxu0 0.0
    %1324 = vmatprep.subr.mxu0 0.0
    %1325 = vmatpush1.msra.mxu0 0.0
    %1326 = vmatprep.mubr.f32.mxu0 0.0
    %1327 = vmatmul.mubr.f32.gmra.mrb[0].mxu0 %v1260
    %v1328 = vpop.f32.mrb[0].mxu0
    %v1329 = vadd.f32 0.0, %v1328
    %v1330 = vpop.f32.mrb[0].mxu0
    %1331 = vdwg.mxu0
    %v1333 = vrot.slane %v1329, 6
    %v1335 = vadd.f32 %v151, %v1333
    %v1336 = vxor.u32 %v1335, 2147483648
    %v1337 = vmul.f32 %v1336, 1.442695
    %v1338 = vpow.pop %v1337
    %v1339 = vadd.f32 %v1338, 1.0
    %v1340 = vrcp.pop %v1339
    %v1341 = vmul.f32 1.0, %v1340
    %v1342 = vadd.f32 %v1329, %v237
    %v1344 = vrot.slane %v1342, 6
    %1345 = vrot.lane.b32.xlu0 %v1344, 64
    %v1346 = vpop.permute.xlu0 %1345
    %v1348 = vmul.f32 %v1341, %v1346
    %1350 = vrot.lane.b32.xlu0 %v1348, 64
    %v1351 = vpop.permute.xlu0 %1350
    %v1353 = vadd.f32 %v151, %v1351
    %v1354 = vtanh.pop %v1353
    %v1356 = vrot.slane %v1354, 2
    %v1358 = vsub.f32 %v1149, %v1356
    %v1360 = vrot.slane %v1358, 6
    %1361 = vrot.lane.b32.xlu0 %v1360, 96
    %v1362 = vpop.permute.xlu0 %1361
    %v1364 = vmul.f32 %v1341, %v1362
    %1366 = vrot.lane.b32.xlu0 %v1364, 32
    %v1367 = vpop.permute.xlu0 %1366
    %v1369 = vadd.f32 %v1354, %v1367
    %1371 = vrot.lane.b32.xlu0 %v1369, 64
    %v1372 = vpop.permute.xlu0 %1371
    %v1375 = vrot.slane %v1259, 6
    %1376 = vrot.lane.b32.xlu0 %v1375, 96
    %v1377 = vpop.permute.xlu0 %1376
    %v1379 = vsel %vm154, %v1372, %v1377
    %v1381 = vrot.slane %v1379, 2
    %v1382 = vsel %vm267, %v1381, 0
    %1384 = vmatprep.subr.mxu0 0.0
    %1385 = vmatpush1.msra.mxu0 %v30
    %1386 = vmatprep.subr.mxu0 0.0
    %1387 = vmatpush1.msra.mxu0 %v31
    %1388 = vmatprep.subr.mxu0 0.0
    %1389 = vmatpush1.msra.mxu0 %v32
    %1390 = vmatprep.subr.mxu0 0.0
    %1391 = vmatpush1.msra.mxu0 %v33
    %1392 = vmatprep.subr.mxu0 0.0
    %1393 = vmatpush1.msra.mxu0 %v34
    %1394 = vmatprep.subr.mxu0 0.0
    %1395 = vmatpush1.msra.mxu0 %v35
    %1396 = vmatprep.subr.mxu0 0.0
    %1397 = vmatpush1.msra.mxu0 %v36
    %1398 = vmatprep.subr.mxu0 0.0
    %1399 = vmatpush1.msra.mxu0 %v37
    %1400 = vmatprep.subr.mxu0 0.0
    %1401 = vmatpush1.msra.mxu0 0.0
    %1402 = vmatprep.subr.mxu0 0.0
    %1403 = vmatpush1.msra.mxu0 0.0
    %1404 = vmatprep.subr.mxu0 0.0
    %1405 = vmatpush1.msra.mxu0 0.0
    %1406 = vmatprep.subr.mxu0 0.0
    %1407 = vmatpush1.msra.mxu0 0.0
    %1408 = vmatprep.subr.mxu0 0.0
    %1409 = vmatpush1.msra.mxu0 0.0
    %1410 = vmatprep.subr.mxu0 0.0
    %1411 = vmatpush1.msra.mxu0 0.0
    %1412 = vmatprep.subr.mxu0 0.0
    %1413 = vmatpush1.msra.mxu0 0.0
    %1414 = vmatprep.subr.mxu0 0.0
    %1415 = vmatpush1.msra.mxu0 0.0
    %1416 = vmatprep.subr.mxu0 0.0
    %1417 = vmatpush1.msra.mxu0 0.0
    %1418 = vmatprep.subr.mxu0 0.0
    %1419 = vmatpush1.msra.mxu0 0.0
    %1420 = vmatprep.subr.mxu0 0.0
    %1421 = vmatpush1.msra.mxu0 0.0
    %1422 = vmatprep.subr.mxu0 0.0
    %1423 = vmatpush1.msra.mxu0 0.0
    %1424 = vmatprep.subr.mxu0 0.0
    %1425 = vmatpush1.msra.mxu0 0.0
    %1426 = vmatprep.subr.mxu0 0.0
    %1427 = vmatpush1.msra.mxu0 0.0
    %1428 = vmatprep.subr.mxu0 0.0
    %1429 = vmatpush1.msra.mxu0 0.0
    %1430 = vmatprep.subr.mxu0 0.0
    %1431 = vmatpush1.msra.mxu0 0.0
    %1432 = vmatprep.subr.mxu0 0.0
    %1433 = vmatpush1.msra.mxu0 0.0
    %1434 = vmatprep.subr.mxu0 0.0
    %1435 = vmatpush1.msra.mxu0 0.0
    %1436 = vmatprep.subr.mxu0 0.0
    %1437 = vmatpush1.msra.mxu0 0.0
    %1438 = vmatprep.subr.mxu0 0.0
    %1439 = vmatpush1.msra.mxu0 0.0
    %1440 = vmatprep.subr.mxu0 0.0
    %1441 = vmatpush1.msra.mxu0 0.0
    %1442 = vmatprep.subr.mxu0 0.0
    %1443 = vmatpush1.msra.mxu0 0.0
    %1444 = vmatprep.subr.mxu0 0.0
    %1445 = vmatpush1.msra.mxu0 0.0
    %1446 = vmatprep.subr.mxu0 0.0
    %1447 = vmatpush1.msra.mxu0 0.0
    %1448 = vmatprep.mubr.f32.mxu0 0.0
    %1449 = vmatmul.mubr.f32.gmra.mrb[0].mxu0 %v1382
    %v1450 = vpop.f32.mrb[0].mxu0
    %v1451 = vadd.f32 %v67, %v1450
    %v1452 = vpop.f32.mrb[0].mxu0
    %1453 = vdwg.mxu0
    %v1454 = vxor.u32 %v1451, 2147483648
    %v1455 = vmul.f32 %v1454, 1.442695
    %v1456 = vpow.pop %v1455
    %v1457 = vadd.f32 %v1456, 1.0
    %v1458 = vrcp.pop %v1457
    %v1459 = vmul.f32 1.0, %v1458
    %1461 = vrot.lane.b32.xlu0 %v1451, 32
    %v1462 = vpop.permute.xlu0 %1461
    %v1464 = vmul.f32 %v1459, %v1462
    %1466 = vrot.lane.b32.xlu0 %v1464, 64
    %v1467 = vpop.permute.xlu0 %1466
    %v1469 = vadd.f32 %v1451, %v1467
    %v1470 = vtanh.pop %v1469
    %v1471 = vsub.f32 %v1259, %v1470
    %1473 = vrot.lane.b32.xlu0 %v1471, 96
    %v1474 = vpop.permute.xlu0 %1473
    %v1476 = vmul.f32 %v1459, %v1474
    %1478 = vrot.lane.b32.xlu0 %v1476, 32
    %v1479 = vpop.permute.xlu0 %1478
    %v1481 = vadd.f32 %v1470, %v1479
    %v1482 = vrot.slane %v1369, 2
    %1483 = vrot.lane.b32.xlu0 %v1482, 64
    %v1484 = vpop.permute.xlu0 %1483
    %v1485 = vsel %vm154, %v1484, 0
    %1487 = vmatprep.subr.mxu0 0.0
    %1488 = vmatpush1.msra.mxu0 %v26
    %1489 = vmatprep.subr.mxu0 0.0
    %1490 = vmatpush1.msra.mxu0 %v27
    %1491 = vmatprep.subr.mxu0 0.0
    %1492 = vmatpush1.msra.mxu0 %v28
    %1493 = vmatprep.subr.mxu0 0.0
    %1494 = vmatpush1.msra.mxu0 %v29
    %1495 = vmatprep.subr.mxu0 0.0
    %1496 = vmatpush1.msra.mxu0 0.0
    %1497 = vmatprep.subr.mxu0 0.0
    %1498 = vmatpush1.msra.mxu0 0.0
    %1499 = vmatprep.subr.mxu0 0.0
    %1500 = vmatpush1.msra.mxu0 0.0
    %1501 = vmatprep.subr.mxu0 0.0
    %1502 = vmatpush1.msra.mxu0 0.0
    %1503 = vmatprep.subr.mxu0 0.0
    %1504 = vmatpush1.msra.mxu0 0.0
    %1505 = vmatprep.subr.mxu0 0.0
    %1506 = vmatpush1.msra.mxu0 0.0
    %1507 = vmatprep.subr.mxu0 0.0
    %1508 = vmatpush1.msra.mxu0 0.0
    %1509 = vmatprep.subr.mxu0 0.0
    %1510 = vmatpush1.msra.mxu0 0.0
    %1511 = vmatprep.subr.mxu0 0.0
    %1512 = vmatpush1.msra.mxu0 0.0
    %1513 = vmatprep.subr.mxu0 0.0
    %1514 = vmatpush1.msra.mxu0 0.0
    %1515 = vmatprep.subr.mxu0 0.0
    %1516 = vmatpush1.msra.mxu0 0.0
    %1517 = vmatprep.subr.mxu0 0.0
    %1518 = vmatpush1.msra.mxu0 0.0
    %1519 = vmatprep.subr.mxu0 0.0
    %1520 = vmatpush1.msra.mxu0 0.0
    %1521 = vmatprep.subr.mxu0 0.0
    %1522 = vmatpush1.msra.mxu0 0.0
    %1523 = vmatprep.subr.mxu0 0.0
    %1524 = vmatpush1.msra.mxu0 0.0
    %1525 = vmatprep.subr.mxu0 0.0
    %1526 = vmatpush1.msra.mxu0 0.0
    %1527 = vmatprep.subr.mxu0 0.0
    %1528 = vmatpush1.msra.mxu0 0.0
    %1529 = vmatprep.subr.mxu0 0.0
    %1530 = vmatpush1.msra.mxu0 0.0
    %1531 = vmatprep.subr.mxu0 0.0
    %1532 = vmatpush1.msra.mxu0 0.0
    %1533 = vmatprep.subr.mxu0 0.0
    %1534 = vmatpush1.msra.mxu0 0.0
    %1535 = vmatprep.subr.mxu0 0.0
    %1536 = vmatpush1.msra.mxu0 0.0
    %1537 = vmatprep.subr.mxu0 0.0
    %1538 = vmatpush1.msra.mxu0 0.0
    %1539 = vmatprep.subr.mxu0 0.0
    %1540 = vmatpush1.msra.mxu0 0.0
    %1541 = vmatprep.subr.mxu0 0.0
    %1542 = vmatpush1.msra.mxu0 0.0
    %1543 = vmatprep.subr.mxu0 0.0
    %1544 = vmatpush1.msra.mxu0 0.0
    %1545 = vmatprep.subr.mxu0 0.0
    %1546 = vmatpush1.msra.mxu0 0.0
    %1547 = vmatprep.subr.mxu0 0.0
    %1548 = vmatpush1.msra.mxu0 0.0
    %1549 = vmatprep.subr.mxu0 0.0
    %1550 = vmatpush1.msra.mxu0 0.0
    %1551 = vmatprep.mubr.f32.mxu0 0.0
    %1552 = vmatmul.mubr.f32.gmra.mrb[0].mxu0 %v1485
    %v1553 = vpop.f32.mrb[0].mxu0
    %v1554 = vadd.f32 0.0, %v1553
    %v1555 = vpop.f32.mrb[0].mxu0
    %1556 = vdwg.mxu0
    %v1558 = vrot.slane %v1554, 4
    %v1560 = vadd.f32 %v151, %v1558
    %v1561 = vxor.u32 %v1560, 2147483648
    %v1562 = vmul.f32 %v1561, 1.442695
    %v1563 = vpow.pop %v1562
    %v1564 = vadd.f32 %v1563, 1.0
    %v1565 = vrcp.pop %v1564
    %v1566 = vmul.f32 1.0, %v1565
    %v1567 = vadd.f32 %v1554, %v237
    %v1569 = vrot.slane %v1567, 4
    %1570 = vrot.lane.b32.xlu0 %v1569, 64
    %v1571 = vpop.permute.xlu0 %1570
    %v1573 = vmul.f32 %v1566, %v1571
    %1575 = vrot.lane.b32.xlu0 %v1573, 64
    %v1576 = vpop.permute.xlu0 %1575
    %v1578 = vadd.f32 %v151, %v1576
    %v1579 = vtanh.pop %v1578
    %v1581 = vrot.slane %v1579, 2
    %v1583 = vsub.f32 %v1369, %v1581
    %v1585 = vrot.slane %v1583, 6
    %1586 = vrot.lane.b32.xlu0 %v1585, 96
    %v1587 = vpop.permute.xlu0 %1586
    %v1589 = vmul.f32 %v1566, %v1587
    %1591 = vrot.lane.b32.xlu0 %v1589, 32
    %v1592 = vpop.permute.xlu0 %1591
    %v1594 = vadd.f32 %v1579, %v1592
    %1596 = vrot.lane.b32.xlu0 %v1594, 64
    %v1597 = vpop.permute.xlu0 %1596
    %v1600 = vrot.slane %v1481, 4
    %1601 = vrot.lane.b32.xlu0 %v1600, 96
    %v1602 = vpop.permute.xlu0 %1601
    %v1604 = vsel %vm154, %v1597, %v1602
    %v1606 = vrot.slane %v1604, 4
    %v1607 = vsel %vm267, %v1606, 0
    %1609 = vmatprep.subr.mxu0 0.0
    %1610 = vmatpush1.msra.mxu0 %v30
    %1611 = vmatprep.subr.mxu0 0.0
    %1612 = vmatpush1.msra.mxu0 %v31
    %1613 = vmatprep.subr.mxu0 0.0
    %1614 = vmatpush1.msra.mxu0 %v32
    %1615 = vmatprep.subr.mxu0 0.0
    %1616 = vmatpush1.msra.mxu0 %v33
    %1617 = vmatprep.subr.mxu0 0.0
    %1618 = vmatpush1.msra.mxu0 %v34
    %1619 = vmatprep.subr.mxu0 0.0
    %1620 = vmatpush1.msra.mxu0 %v35
    %1621 = vmatprep.subr.mxu0 0.0
    %1622 = vmatpush1.msra.mxu0 %v36
    %1623 = vmatprep.subr.mxu0 0.0
    %1624 = vmatpush1.msra.mxu0 %v37
    %1625 = vmatprep.subr.mxu0 0.0
    %1626 = vmatpush1.msra.mxu0 0.0
    %1627 = vmatprep.subr.mxu0 0.0
    %1628 = vmatpush1.msra.mxu0 0.0
    %1629 = vmatprep.subr.mxu0 0.0
    %1630 = vmatpush1.msra.mxu0 0.0
    %1631 = vmatprep.subr.mxu0 0.0
    %1632 = vmatpush1.msra.mxu0 0.0
    %1633 = vmatprep.subr.mxu0 0.0
    %1634 = vmatpush1.msra.mxu0 0.0
    %1635 = vmatprep.subr.mxu0 0.0
    %1636 = vmatpush1.msra.mxu0 0.0
    %1637 = vmatprep.subr.mxu0 0.0
    %1638 = vmatpush1.msra.mxu0 0.0
    %1639 = vmatprep.subr.mxu0 0.0
    %1640 = vmatpush1.msra.mxu0 0.0
    %1641 = vmatprep.subr.mxu0 0.0
    %1642 = vmatpush1.msra.mxu0 0.0
    %1643 = vmatprep.subr.mxu0 0.0
    %1644 = vmatpush1.msra.mxu0 0.0
    %1645 = vmatprep.subr.mxu0 0.0
    %1646 = vmatpush1.msra.mxu0 0.0
    %1647 = vmatprep.subr.mxu0 0.0
    %1648 = vmatpush1.msra.mxu0 0.0
    %1649 = vmatprep.subr.mxu0 0.0
    %1650 = vmatpush1.msra.mxu0 0.0
    %1651 = vmatprep.subr.mxu0 0.0
    %1652 = vmatpush1.msra.mxu0 0.0
    %1653 = vmatprep.subr.mxu0 0.0
    %1654 = vmatpush1.msra.mxu0 0.0
    %1655 = vmatprep.subr.mxu0 0.0
    %1656 = vmatpush1.msra.mxu0 0.0
    %1657 = vmatprep.subr.mxu0 0.0
    %1658 = vmatpush1.msra.mxu0 0.0
    %1659 = vmatprep.subr.mxu0 0.0
    %1660 = vmatpush1.msra.mxu0 0.0
    %1661 = vmatprep.subr.mxu0 0.0
    %1662 = vmatpush1.msra.mxu0 0.0
    %1663 = vmatprep.subr.mxu0 0.0
    %1664 = vmatpush1.msra.mxu0 0.0
    %1665 = vmatprep.subr.mxu0 0.0
    %1666 = vmatpush1.msra.mxu0 0.0
    %1667 = vmatprep.subr.mxu0 0.0
    %1668 = vmatpush1.msra.mxu0 0.0
    %1669 = vmatprep.subr.mxu0 0.0
    %1670 = vmatpush1.msra.mxu0 0.0
    %1671 = vmatprep.subr.mxu0 0.0
    %1672 = vmatpush1.msra.mxu0 0.0
    %1673 = vmatprep.mubr.f32.mxu0 0.0
    %1674 = vmatmul.mubr.f32.gmra.mrb[0].mxu0 %v1607
    %v1675 = vpop.f32.mrb[0].mxu0
    %v1676 = vadd.f32 %v67, %v1675
    %v1677 = vpop.f32.mrb[0].mxu0
    %1678 = vdwg.mxu0
    %v1679 = vxor.u32 %v1676, 2147483648
    %v1680 = vmul.f32 %v1679, 1.442695
    %v1681 = vpow.pop %v1680
    %v1682 = vadd.f32 %v1681, 1.0
    %v1683 = vrcp.pop %v1682
    %v1684 = vmul.f32 1.0, %v1683
    %1686 = vrot.lane.b32.xlu0 %v1676, 32
    %v1687 = vpop.permute.xlu0 %1686
    %v1689 = vmul.f32 %v1684, %v1687
    %1691 = vrot.lane.b32.xlu0 %v1689, 64
    %v1692 = vpop.permute.xlu0 %1691
    %v1694 = vadd.f32 %v1676, %v1692
    %v1695 = vtanh.pop %v1694
    %v1696 = vsub.f32 %v1481, %v1695
    %1698 = vrot.lane.b32.xlu0 %v1696, 96
    %v1699 = vpop.permute.xlu0 %1698
    %v1701 = vmul.f32 %v1684, %v1699
    %1703 = vrot.lane.b32.xlu0 %v1701, 32
    %v1704 = vpop.permute.xlu0 %1703
    %v1706 = vadd.f32 %v1695, %v1704
    %v1707 = vrot.slane %v1594, 4
    %1708 = vrot.lane.b32.xlu0 %v1707, 64
    %v1709 = vpop.permute.xlu0 %1708
    %v1710 = vsel %vm154, %v1709, 0
    %1712 = vmatprep.subr.mxu0 0.0
    %1713 = vmatpush1.msra.mxu0 %v26
    %1714 = vmatprep.subr.mxu0 0.0
    %1715 = vmatpush1.msra.mxu0 %v27
    %1716 = vmatprep.subr.mxu0 0.0
    %1717 = vmatpush1.msra.mxu0 %v28
    %1718 = vmatprep.subr.mxu0 0.0
    %1719 = vmatpush1.msra.mxu0 %v29
    %1720 = vmatprep.subr.mxu0 0.0
    %1721 = vmatpush1.msra.mxu0 0.0
    %1722 = vmatprep.subr.mxu0 0.0
    %1723 = vmatpush1.msra.mxu0 0.0
    %1724 = vmatprep.subr.mxu0 0.0
    %1725 = vmatpush1.msra.mxu0 0.0
    %1726 = vmatprep.subr.mxu0 0.0
    %1727 = vmatpush1.msra.mxu0 0.0
    %1728 = vmatprep.subr.mxu0 0.0
    %1729 = vmatpush1.msra.mxu0 0.0
    %1730 = vmatprep.subr.mxu0 0.0
    %1731 = vmatpush1.msra.mxu0 0.0
    %1732 = vmatprep.subr.mxu0 0.0
    %1733 = vmatpush1.msra.mxu0 0.0
    %1734 = vmatprep.subr.mxu0 0.0
    %1735 = vmatpush1.msra.mxu0 0.0
    %1736 = vmatprep.subr.mxu0 0.0
    %1737 = vmatpush1.msra.mxu0 0.0
    %1738 = vmatprep.subr.mxu0 0.0
    %1739 = vmatpush1.msra.mxu0 0.0
    %1740 = vmatprep.subr.mxu0 0.0
    %1741 = vmatpush1.msra.mxu0 0.0
    %1742 = vmatprep.subr.mxu0 0.0
    %1743 = vmatpush1.msra.mxu0 0.0
    %1744 = vmatprep.subr.mxu0 0.0
    %1745 = vmatpush1.msra.mxu0 0.0
    %1746 = vmatprep.subr.mxu0 0.0
    %1747 = vmatpush1.msra.mxu0 0.0
    %1748 = vmatprep.subr.mxu0 0.0
    %1749 = vmatpush1.msra.mxu0 0.0
    %1750 = vmatprep.subr.mxu0 0.0
    %1751 = vmatpush1.msra.mxu0 0.0
    %1752 = vmatprep.subr.mxu0 0.0
    %1753 = vmatpush1.msra.mxu0 0.0
    %1754 = vmatprep.subr.mxu0 0.0
    %1755 = vmatpush1.msra.mxu0 0.0
    %1756 = vmatprep.subr.mxu0 0.0
    %1757 = vmatpush1.msra.mxu0 0.0
    %1758 = vmatprep.subr.mxu0 0.0
    %1759 = vmatpush1.msra.mxu0 0.0
    %1760 = vmatprep.subr.mxu0 0.0
    %1761 = vmatpush1.msra.mxu0 0.0
    %1762 = vmatprep.subr.mxu0 0.0
    %1763 = vmatpush1.msra.mxu0 0.0
    %1764 = vmatprep.subr.mxu0 0.0
    %1765 = vmatpush1.msra.mxu0 0.0
    %1766 = vmatprep.subr.mxu0 0.0
    %1767 = vmatpush1.msra.mxu0 0.0
    %1768 = vmatprep.subr.mxu0 0.0
    %1769 = vmatpush1.msra.mxu0 0.0
    %1770 = vmatprep.subr.mxu0 0.0
    %1771 = vmatpush1.msra.mxu0 0.0
    %1772 = vmatprep.subr.mxu0 0.0
    %1773 = vmatpush1.msra.mxu0 0.0
    %1774 = vmatprep.subr.mxu0 0.0
    %1775 = vmatpush1.msra.mxu0 0.0
    %1776 = vmatprep.mubr.f32.mxu0 0.0
    %1777 = vmatmul.mubr.f32.gmra.mrb[0].mxu0 %v1710
    %v1778 = vpop.f32.mrb[0].mxu0
    %v1779 = vadd.f32 0.0, %v1778
    %v1780 = vpop.f32.mrb[0].mxu0
    %1781 = vdwg.mxu0
    %v1783 = vrot.slane %v1779, 2
    %v1785 = vadd.f32 %v151, %v1783
    %v1786 = vxor.u32 %v1785, 2147483648
    %v1787 = vmul.f32 %v1786, 1.442695
    %v1788 = vpow.pop %v1787
    %v1789 = vadd.f32 %v1788, 1.0
    %v1790 = vrcp.pop %v1789
    %v1791 = vmul.f32 1.0, %v1790
    %v1792 = vadd.f32 %v1779, %v237
    %v1794 = vrot.slane %v1792, 2
    %1795 = vrot.lane.b32.xlu0 %v1794, 64
    %v1796 = vpop.permute.xlu0 %1795
    %v1798 = vmul.f32 %v1791, %v1796
    %1800 = vrot.lane.b32.xlu0 %v1798, 64
    %v1801 = vpop.permute.xlu0 %1800
    %v1803 = vadd.f32 %v151, %v1801
    %v1804 = vtanh.pop %v1803
    %v1806 = vrot.slane %v1804, 2
    %v1808 = vsub.f32 %v1594, %v1806
    %v1810 = vrot.slane %v1808, 6
    %1811 = vrot.lane.b32.xlu0 %v1810, 96
    %v1812 = vpop.permute.xlu0 %1811
    %v1814 = vmul.f32 %v1791, %v1812
    %1816 = vrot.lane.b32.xlu0 %v1814, 32
    %v1817 = vpop.permute.xlu0 %1816
    %v1819 = vadd.f32 %v1804, %v1817
    %1821 = vrot.lane.b32.xlu0 %v1819, 64
    %v1822 = vpop.permute.xlu0 %1821
    %v1825 = vrot.slane %v1706, 2
    %1826 = vrot.lane.b32.xlu0 %v1825, 96
    %v1827 = vpop.permute.xlu0 %1826
    %v1829 = vsel %vm154, %v1822, %v1827
    %v1831 = vrot.slane %v1829, 6
    %v1832 = vsel %vm267, %v1831, 0
    %1834 = vmatprep.subr.mxu0 0.0
    %1835 = vmatpush1.msra.mxu0 %v30
    %1836 = vmatprep.subr.mxu0 0.0
    %1837 = vmatpush1.msra.mxu0 %v31
    %1838 = vmatprep.subr.mxu0 0.0
    %1839 = vmatpush1.msra.mxu0 %v32
    %1840 = vmatprep.subr.mxu0 0.0
    %1841 = vmatpush1.msra.mxu0 %v33
    %1842 = vmatprep.subr.mxu0 0.0
    %1843 = vmatpush1.msra.mxu0 %v34
    %1844 = vmatprep.subr.mxu0 0.0
    %1845 = vmatpush1.msra.mxu0 %v35
    %1846 = vmatprep.subr.mxu0 0.0
    %1847 = vmatpush1.msra.mxu0 %v36
    %1848 = vmatprep.subr.mxu0 0.0
    %1849 = vmatpush1.msra.mxu0 %v37
    %1850 = vmatprep.subr.mxu0 0.0
    %1851 = vmatpush1.msra.mxu0 0.0
    %1852 = vmatprep.subr.mxu0 0.0
    %1853 = vmatpush1.msra.mxu0 0.0
    %1854 = vmatprep.subr.mxu0 0.0
    %1855 = vmatpush1.msra.mxu0 0.0
    %1856 = vmatprep.subr.mxu0 0.0
    %1857 = vmatpush1.msra.mxu0 0.0
    %1858 = vmatprep.subr.mxu0 0.0
    %1859 = vmatpush1.msra.mxu0 0.0
    %1860 = vmatprep.subr.mxu0 0.0
    %1861 = vmatpush1.msra.mxu0 0.0
    %1862 = vmatprep.subr.mxu0 0.0
    %1863 = vmatpush1.msra.mxu0 0.0
    %1864 = vmatprep.subr.mxu0 0.0
    %1865 = vmatpush1.msra.mxu0 0.0
    %1866 = vmatprep.subr.mxu0 0.0
    %1867 = vmatpush1.msra.mxu0 0.0
    %1868 = vmatprep.subr.mxu0 0.0
    %1869 = vmatpush1.msra.mxu0 0.0
    %1870 = vmatprep.subr.mxu0 0.0
    %1871 = vmatpush1.msra.mxu0 0.0
    %1872 = vmatprep.subr.mxu0 0.0
    %1873 = vmatpush1.msra.mxu0 0.0
    %1874 = vmatprep.subr.mxu0 0.0
    %1875 = vmatpush1.msra.mxu0 0.0
    %1876 = vmatprep.subr.mxu0 0.0
    %1877 = vmatpush1.msra.mxu0 0.0
    %1878 = vmatprep.subr.mxu0 0.0
    %1879 = vmatpush1.msra.mxu0 0.0
    %1880 = vmatprep.subr.mxu0 0.0
    %1881 = vmatpush1.msra.mxu0 0.0
    %1882 = vmatprep.subr.mxu0 0.0
    %1883 = vmatpush1.msra.mxu0 0.0
    %1884 = vmatprep.subr.mxu0 0.0
    %1885 = vmatpush1.msra.mxu0 0.0
    %1886 = vmatprep.subr.mxu0 0.0
    %1887 = vmatpush1.msra.mxu0 0.0
    %1888 = vmatprep.subr.mxu0 0.0
    %1889 = vmatpush1.msra.mxu0 0.0
    %1890 = vmatprep.subr.mxu0 0.0
    %1891 = vmatpush1.msra.mxu0 0.0
    %1892 = vmatprep.subr.mxu0 0.0
    %1893 = vmatpush1.msra.mxu0 0.0
    %1894 = vmatprep.subr.mxu0 0.0
    %1895 = vmatpush1.msra.mxu0 0.0
    %1896 = vmatprep.subr.mxu0 0.0
    %1897 = vmatpush1.msra.mxu0 0.0
    %1898 = vmatprep.mubr.f32.mxu0 0.0
    %1899 = vmatmul.mubr.f32.gmra.mrb[0].mxu0 %v1832
    %v1900 = vpop.f32.mrb[0].mxu0
    %v1901 = vadd.f32 %v67, %v1900
    %v1902 = vpop.f32.mrb[0].mxu0
    %1903 = vdwg.mxu0
    %v1904 = vxor.u32 %v1901, 2147483648
    %v1905 = vmul.f32 %v1904, 1.442695
    %v1906 = vpow.pop %v1905
    %v1907 = vadd.f32 %v1906, 1.0
    %v1908 = vrcp.pop %v1907
    %v1909 = vmul.f32 1.0, %v1908
    %1911 = vrot.lane.b32.xlu0 %v1901, 32
    %v1912 = vpop.permute.xlu0 %1911
    %v1914 = vmul.f32 %v1909, %v1912
    %1916 = vrot.lane.b32.xlu0 %v1914, 64
    %v1917 = vpop.permute.xlu0 %1916
    %v1919 = vadd.f32 %v1901, %v1917
    %v1920 = vtanh.pop %v1919
    %v1921 = vsub.f32 %v1706, %v1920
    %1923 = vrot.lane.b32.xlu0 %v1921, 96
    %v1924 = vpop.permute.xlu0 %1923
    %v1926 = vmul.f32 %v1909, %v1924
    %1928 = vrot.lane.b32.xlu0 %v1926, 32
    %v1929 = vpop.permute.xlu0 %1928
    %v1931 = vadd.f32 %v1920, %v1929
    %v1932 = vrot.slane %v590, 6
    %v1934 = vrot.slane %v815, 4
    %v1936 = vrot.slane %v1040, 2
    %v1938 = vrot.slane %v1481, 6
    %v1940 = vrot.slane %v1706, 4
    %v1943 = vrot.slane %v1931, 2
    %vm1945 = vcmask 1041408
    %v1946 = vsel %vm1945, %v368, %v1932
    %vm1947 = vcmask 1043456
    %v1948 = vsel %vm1947, %v1946, %v1934
    %vm1949 = vcmask 1045504
    %v1950 = vsel %vm1949, %v1948, %v1936
    %v1951 = vsel %vm1945, %v1259, %v1938
    %v1952 = vsel %vm1947, %v1951, %v1940
    %v1953 = vsel %vm1949, %v1952, %v1943
    %v1954 = vlaneseq
    %v1955 = vshrl.u32 %v1954, 7
    %v1956 = vsub.s32 0, %v1955
    %v1957 = vrot.slane %v68, %v1956
    %1960 = vrot.lane.b32.xlu0 %v1950, 64
    %v1961 = vpop.permute.xlu0 %1960
    %1962 = vrot.lane.b32.xlu0 %v1953, 64
    %v1963 = vpop.permute.xlu0 %1962
    %v1964 = vsel %vm154, %v1961, 0
    %v1966 = vsel %vm154, %v1963, 0
    %1968 = vmatprep.subr.mxu0 0.0
    %1969 = vmatpush1.msra.mxu0 %v38
    %1970 = vmatprep.subr.mxu0 0.0
    %1971 = vmatpush1.msra.mxu0 %v39
    %1972 = vmatprep.subr.mxu0 0.0
    %1973 = vmatpush1.msra.mxu0 %v40
    %1974 = vmatprep.subr.mxu0 0.0
    %1975 = vmatpush1.msra.mxu0 %v41
    %1976 = vmatprep.subr.mxu0 0.0
    %1977 = vmatpush1.msra.mxu0 0.0
    %1978 = vmatprep.subr.mxu0 0.0
    %1979 = vmatpush1.msra.mxu0 0.0
    %1980 = vmatprep.subr.mxu0 0.0
    %1981 = vmatpush1.msra.mxu0 0.0
    %1982 = vmatprep.subr.mxu0 0.0
    %1983 = vmatpush1.msra.mxu0 0.0
    %1984 = vmatprep.subr.mxu0 0.0
    %1985 = vmatpush1.msra.mxu0 0.0
    %1986 = vmatprep.subr.mxu0 0.0
    %1987 = vmatpush1.msra.mxu0 0.0
    %1988 = vmatprep.subr.mxu0 0.0
    %1989 = vmatpush1.msra.mxu0 0.0
    %1990 = vmatprep.subr.mxu0 0.0
    %1991 = vmatpush1.msra.mxu0 0.0
    %1992 = vmatprep.subr.mxu0 0.0
    %1993 = vmatpush1.msra.mxu0 0.0
    %1994 = vmatprep.subr.mxu0 0.0
    %1995 = vmatpush1.msra.mxu0 0.0
    %1996 = vmatprep.subr.mxu0 0.0
    %1997 = vmatpush1.msra.mxu0 0.0
    %1998 = vmatprep.subr.mxu0 0.0
    %1999 = vmatpush1.msra.mxu0 0.0
    %2000 = vmatprep.subr.mxu0 0.0
    %2001 = vmatpush1.msra.mxu0 0.0
    %2002 = vmatprep.subr.mxu0 0.0
    %2003 = vmatpush1.msra.mxu0 0.0
    %2004 = vmatprep.subr.mxu0 0.0
    %2005 = vmatpush1.msra.mxu0 0.0
    %2006 = vmatprep.subr.mxu0 0.0
    %2007 = vmatpush1.msra.mxu0 0.0
    %2008 = vmatprep.subr.mxu0 0.0
    %2009 = vmatpush1.msra.mxu0 0.0
    %2010 = vmatprep.subr.mxu0 0.0
    %2011 = vmatpush1.msra.mxu0 0.0
    %2012 = vmatprep.subr.mxu0 0.0
    %2013 = vmatpush1.msra.mxu0 0.0
    %2014 = vmatprep.subr.mxu0 0.0
    %2015 = vmatpush1.msra.mxu0 0.0
    %2016 = vmatprep.subr.mxu0 0.0
    %2017 = vmatpush1.msra.mxu0 0.0
    %2018 = vmatprep.subr.mxu0 0.0
    %2019 = vmatpush1.msra.mxu0 0.0
    %2020 = vmatprep.subr.mxu0 0.0
    %2021 = vmatpush1.msra.mxu0 0.0
    %2022 = vmatprep.subr.mxu0 0.0
    %2023 = vmatpush1.msra.mxu0 0.0
    %2024 = vmatprep.subr.mxu0 0.0
    %2025 = vmatpush1.msra.mxu0 0.0
    %2026 = vmatprep.subr.mxu0 0.0
    %2027 = vmatpush1.msra.mxu0 0.0
    %2028 = vmatprep.subr.mxu0 0.0
    %2029 = vmatpush1.msra.mxu0 0.0
    %2030 = vmatprep.subr.mxu0 0.0
    %2031 = vmatpush1.msra.mxu0 0.0
    %2032 = vmatprep.mubr.f32.mxu0 0.0
    %2033 = vmatmul.mubr.f32.gmra.mrb[0].mxu0 %v1964
    %v2034 = vpop.f32.mrb[0].mxu0
    %v2035 = vadd.f32 %v1957, %v2034
    %v2036 = vpop.f32.mrb[0].mxu0
    %2037 = vmatprep.mubr.f32.mxu0 0.0
    %2038 = vmatmul.mubr.f32.gmra.mrb[0].mxu0 %v1966
    %v2039 = vpop.f32.mrb[0].mxu0
    %v2040 = vadd.f32 %v1957, %v2039
    %v2041 = vpop.f32.mrb[0].mxu0
    %2042 = vdwg.mxu0
    %v2043 = vmax.f32 %v2035, 0.0
    %v2044 = vmax.f32 %v2040, 0.0
    %v2045 = vlaneseq
    %v2046 = vshrl.u32 %v2045, 7
    %v2047 = vsub.s32 0, %v2046
    %v2048 = vrot.slane %v69, %v2047
    %2049 = vmatprep.subr.mxu0 0.0
    %2050 = vmatpush1.msra.mxu0 %v42
    %2051 = vmatprep.subr.mxu0 0.0
    %2052 = vmatpush1.msra.mxu0 %v43
    %2053 = vmatprep.subr.mxu0 0.0
    %2054 = vmatpush1.msra.mxu0 %v44
    %2055 = vmatprep.subr.mxu0 0.0
    %2056 = vmatpush1.msra.mxu0 %v45
    %2057 = vmatprep.subr.mxu0 0.0
    %2058 = vmatpush1.msra.mxu0 %v46
    %2059 = vmatprep.subr.mxu0 0.0
    %2060 = vmatpush1.msra.mxu0 %v47
    %2061 = vmatprep.subr.mxu0 0.0
    %2062 = vmatpush1.msra.mxu0 %v48
    %2063 = vmatprep.subr.mxu0 0.0
    %2064 = vmatpush1.msra.mxu0 %v49
    %2065 = vmatprep.subr.mxu0 0.0
    %2066 = vmatpush1.msra.mxu0 %v50
    %2067 = vmatprep.subr.mxu0 0.0
    %2068 = vmatpush1.msra.mxu0 %v51
    %2069 = vmatprep.subr.mxu0 0.0
    %2070 = vmatpush1.msra.mxu0 %v52
    %2071 = vmatprep.subr.mxu0 0.0
    %2072 = vmatpush1.msra.mxu0 %v53
    %2073 = vmatprep.subr.mxu0 0.0
    %2074 = vmatpush1.msra.mxu0 %v54
    %2075 = vmatprep.subr.mxu0 0.0
    %2076 = vmatpush1.msra.mxu0 %v55
    %2077 = vmatprep.subr.mxu0 0.0
    %2078 = vmatpush1.msra.mxu0 %v56
    %2079 = vmatprep.subr.mxu0 0.0
    %2080 = vmatpush1.msra.mxu0 %v57
    %2081 = vmatprep.subr.mxu0 0.0
    %2082 = vmatpush1.msra.mxu0 0.0
    %2083 = vmatprep.subr.mxu0 0.0
    %2084 = vmatpush1.msra.mxu0 0.0
    %2085 = vmatprep.subr.mxu0 0.0
    %2086 = vmatpush1.msra.mxu0 0.0
    %2087 = vmatprep.subr.mxu0 0.0
    %2088 = vmatpush1.msra.mxu0 0.0
    %2089 = vmatprep.subr.mxu0 0.0
    %2090 = vmatpush1.msra.mxu0 0.0
    %2091 = vmatprep.subr.mxu0 0.0
    %2092 = vmatpush1.msra.mxu0 0.0
    %2093 = vmatprep.subr.mxu0 0.0
    %2094 = vmatpush1.msra.mxu0 0.0
    %2095 = vmatprep.subr.mxu0 0.0
    %2096 = vmatpush1.msra.mxu0 0.0
    %2097 = vmatprep.subr.mxu0 0.0
    %2098 = vmatpush1.msra.mxu0 0.0
    %2099 = vmatprep.subr.mxu0 0.0
    %2100 = vmatpush1.msra.mxu0 0.0
    %2101 = vmatprep.subr.mxu0 0.0
    %2102 = vmatpush1.msra.mxu0 0.0
    %2103 = vmatprep.subr.mxu0 0.0
    %2104 = vmatpush1.msra.mxu0 0.0
    %2105 = vmatprep.subr.mxu0 0.0
    %2106 = vmatpush1.msra.mxu0 0.0
    %2107 = vmatprep.subr.mxu0 0.0
    %2108 = vmatpush1.msra.mxu0 0.0
    %2109 = vmatprep.subr.mxu0 0.0
    %2110 = vmatpush1.msra.mxu0 0.0
    %2111 = vmatprep.subr.mxu0 0.0
    %2112 = vmatpush1.msra.mxu0 0.0
    %2113 = vmatprep.mubr.f32.mxu0 0.0
    %2114 = vmatmul.mubr.f32.gmra.mrb[0].mxu0 %v2043
    %v2115 = vpop.f32.mrb[0].mxu0
    %v2116 = vadd.f32 %v2048, %v2115
    %v2117 = vpop.f32.mrb[0].mxu0
    %2118 = vmatprep.mubr.f32.mxu0 0.0
    %2119 = vmatmul.mubr.f32.gmra.mrb[0].mxu0 %v2044
    %v2120 = vpop.f32.mrb[0].mxu0
    %v2121 = vadd.f32 %v2048, %v2120
    %v2122 = vpop.f32.mrb[0].mxu0
    %2123 = vdwg.mxu0
    %v2124 = vrot.slane %v1819, 6
    %v2126 = vrot.slane %v1931, 6
    %v2128 = vsel %vm1945, %v2124, %v2126
    %v2129 = vsel %vm1947, %v2128, 0.0
    %2131 = vrot.lane.b32.xlu0 %v2129, 64
    %v2132 = vpop.permute.xlu0 %2131
    %v2134 = vsel %vm154, %v2132, 0.0
    %2135 = vst [vmem:[%s2] sm:$0xff] %v2116
    %2136 = vst [vmem:[%s2 + $0x8] sm:$0xff] %v2121
    %2137 = vst [vmem:[%s2 + $0x10] sm:$0xff] %v2134
    // Predicated region
    $region14: #{pgrnn_forward.1} parent=1 // pred_check
      _
    $region15: #{pgrnn_forward.1} parent=1 // pred_check_branch
      %2139 = sbr.rel (0) target = $region17
    $region16: #{pgrnn_forward.1} parent=1 // pred_region
      _
    $region17: #{pgrnn_forward.1} parent=1 // pred_fallthru
      _
    // Predicated region
    $region18: #{pgrnn_forward.1} parent=1 // pred_check
      _
    $region19: #{pgrnn_forward.1} parent=1 // pred_check_branch
      %2141 = sbr.rel (0) target = $region21
    $region20: #{pgrnn_forward.1} parent=1 // pred_region
      _
    $region21: #{pgrnn_forward.1} parent=1 // pred_fallthru
      _
    %2142 = vsyncpa [#allocation3], 1

</llo_original>
